<compile_context>
chip_gen: v5e
topology: v5e:2x2
jax: 0.10.0
libtpu: 0.0.40
codegen_flags: <defaults>
</compile_context>

<pallas_src>
import functools
import math

import jax
import jax.numpy as jnp
from jax import lax
from jax.experimental import pallas as pl
from jax.experimental.pallas import tpu as pltpu

EPS = 1e-5
_VMEM_LIMIT = 32 * 1024 * 1024   # explicit scoped-VMEM budget (fits v7x 64 MiB physical)


# ---------------------------------------------------------------------------
# Kernel 1: 3x3 conv as a single fused im2col matmul + single-pass BN partial stats
# ---------------------------------------------------------------------------
def _conv3x3_stats_kernel(x_ref, w_ref, y_ref, s_ref, *, th, W, Cin, Cout):
    # x_ref: (1, th+2, W+2, Cin) bf16 halo tile;  w_ref: (9*Cin, Cout) bf16 (stays resident)
    xt = x_ref[0]                                              # (th+2, W+2, Cin)

    # im2col: one (th*W, 9*Cin) slab -> single MXU matmul (contraction depth 9*Cin)
    cols = [
        xt[ky:ky + th, kx:kx + W, :].reshape(th * W, Cin)
        for ky in range(3) for kx in range(3)
    ]
    patches = jnp.concatenate(cols, axis=-1)                   # (th*W, 9*Cin) bf16
    y = jnp.dot(patches, w_ref[...],
                preferred_element_type=jnp.float32)            # (th*W, Cout) f32

    # Keep the matmul-native (rows, Cout) layout for the store (avoids an in-kernel
    # minor-dim relayout); at real UNet widths (Cout >= 128) this store is lane-dense.
    y_ref[0] = y

    # Single-pass BN partial statistics for this tile (sum, sum of squares).
    s1 = jnp.sum(y, axis=0, keepdims=True)                     # (1, Cout)
    s2 = jnp.sum(y * y, axis=0, keepdims=True)                 # (1, Cout)
    s_ref[0] = jnp.concatenate([s1, s2], axis=0)               # (2, Cout)


# ---------------------------------------------------------------------------
# Kernel 2: fused BatchNorm affine (precomputed scale/shift) + ReLU, lane-dense
# ---------------------------------------------------------------------------
def _bn_relu_kernel(y_ref, sc_ref, sh_ref, o_ref):
    o_ref[...] = jnp.maximum(y_ref[...] * sc_ref[...] + sh_ref[...],
                             0.0).astype(o_ref.dtype)


# ---------------------------------------------------------------------------
# Wrappers
# ---------------------------------------------------------------------------
def _pick_row_tile(h):
    for cand in (8, 4, 2, 1):
        if h % cand == 0:
            return cand
    return 1


def _pick_flat_tile(m):
    for cand in (512, 256, 128, 64, 32, 16):
        if m % cand == 0:
            return cand
    return m


def _conv_bn_stage(x_nhwc, w_hwio, th):
    """3x3 SAME conv (no bias) + global batch statistics of its output.

    Returns (y, mean, var).  y is (N*nH, th*W, Cout) f32, row-major over (n, h, w, c).
    """
    N, H, W, Cin = x_nhwc.shape
    Cout = w_hwio.shape[-1]
    assert H % th == 0
    nH = H // th

    xb = x_nhwc.astype(jnp.bfloat16)                 # bf16 MXU operands, halves DMA bytes
    xp = jnp.pad(xb, ((0, 0), (1, 1), (1, 1), (0, 0)))
    # H-row tiles, each with a 1-row halo on both sides (duplication is only 2/th rows).
    # TODO(synk): express the halo with pl.Element element-offset BlockSpecs to avoid
    # materializing the overlapping tiles (and the jnp.pad copy) in HBM.
    tiles = jnp.stack([xp[:, i * th:i * th + th + 2] for i in range(nH)], axis=1)
    tiles = tiles.reshape(N * nH, th + 2, W + 2, Cin)

    wp = w_hwio.reshape(9 * Cin, Cout).astype(jnp.bfloat16)    # (ky,kx,cin)-packed rows
    G = N * nH

    kern = functools.partial(_conv3x3_stats_kernel, th=th, W=W, Cin=Cin, Cout=Cout)
    y, stats = pl.pallas_call(
        kern,
        grid=(G,),
        in_specs=[
            pl.BlockSpec((1, th + 2, W + 2, Cin), lambda g: (g, 0, 0, 0)),
            pl.BlockSpec((9 * Cin, Cout), lambda g: (0, 0)),   # weights stay VMEM-resident
        ],
        out_specs=[
            pl.BlockSpec((1, th * W, Cout), lambda g: (g, 0, 0)),
            pl.BlockSpec((1, 2, Cout), lambda g: (g, 0, 0)),
        ],
        out_shape=[
            jax.ShapeDtypeStruct((G, th * W, Cout), jnp.float32),
            jax.ShapeDtypeStruct((G, 2, Cout), jnp.float32),
        ],
        compiler_params=pltpu.CompilerParams(
            dimension_semantics=("parallel",),
            vmem_limit_bytes=_VMEM_LIMIT,
        ),
    )(tiles, wp)

    cnt = jnp.float32(N * H * W)
    s = jnp.sum(stats, axis=0)                                 # cross-tile reduction
    mean = s[0] / cnt
    var = jnp.maximum(s[1] / cnt - mean * mean, 0.0)           # biased var (BN train norm)
    return y, mean, var


def _bn_relu_stage(y, scale, shift, Cout, out_dtype):
    """relu(y*scale + shift) on a lane-dense (rows, lcm(Cout,128)) flat view of y."""
    total = y.size
    rw = Cout * (128 // math.gcd(Cout, 128))                   # lcm(Cout, 128)
    assert total % rw == 0
    M = total // rw
    y2d = y.reshape(M, rw)                                     # channel-minor flat view
    reps = rw // Cout
    sc = jnp.tile(scale.astype(jnp.float32), reps).reshape(1, rw)
    sh = jnp.tile(shift.astype(jnp.float32), reps).reshape(1, rw)

    tr = _pick_flat_tile(M)
    out = pl.pallas_call(
        _bn_relu_kernel,
        grid=(M // tr,),
        in_specs=[
            pl.BlockSpec((tr, rw), lambda i: (i, 0)),
            pl.BlockSpec((1, rw), lambda i: (0, 0)),
            pl.BlockSpec((1, rw), lambda i: (0, 0)),
        ],
        out_specs=pl.BlockSpec((tr, rw), lambda i: (i, 0)),
        out_shape=jax.ShapeDtypeStruct((M, rw), out_dtype),
        compiler_params=pltpu.CompilerParams(
            dimension_semantics=("parallel",),
            vmem_limit_bytes=_VMEM_LIMIT,
        ),
    )(y2d, sc, sh)
    return out


def double_conv(x_nchw, w1_hwio, g1, b1, w2_hwio, g2, b2):
    """(N, Cin, H, W) f32 -> (N, Cout, H, W) f32; matches PyTorch DoubleConv forward
    (training-mode BatchNorm batch statistics), conv operands fed to the MXU in bf16."""
    N, Cin, H, W = x_nchw.shape
    Cout = w1_hwio.shape[-1]
    th = _pick_row_tile(H)

    x_nhwc = jnp.transpose(x_nchw, (0, 2, 3, 1))

    # --- conv1 -> BN1(batch stats) -> ReLU ---
    y1, m1, v1 = _conv_bn_stage(x_nhwc, w1_hwio, th)
    sc1 = g1 * lax.rsqrt(v1 + EPS)
    sh1 = b1 - m1 * sc1
    a1 = _bn_relu_stage(y1, sc1, sh1, Cout, jnp.bfloat16)      # bf16: feeds conv2's MXU
    a1_nhwc = a1.reshape(N, H, W, Cout)

    # --- conv2 -> BN2(batch stats) -> ReLU ---
    y2, m2, v2 = _conv_bn_stage(a1_nhwc, w2_hwio, th)
    sc2 = g2 * lax.rsqrt(v2 + EPS)
    sh2 = b2 - m2 * sc2
    out = _bn_relu_stage(y2, sc2, sh2, Cout, jnp.float32)
    out_nhwc = out.reshape(N, H, W, Cout)
    return jnp.transpose(out_nhwc, (0, 3, 1, 2))


# ---------------------------------------------------------------------------
# Reference (XLA) with the same bf16 conv-operand quantization as the kernel path
# ---------------------------------------------------------------------------
def _reference(x_nchw, w1_hwio, g1, b1, w2_hwio, g2, b2):
    dn = ('NHWC', 'HWIO', 'NHWC')

    def conv(x, w):
        return lax.conv_general_dilated(
            x.astype(jnp.bfloat16), w.astype(jnp.bfloat16), (1, 1), 'SAME',
            dimension_numbers=dn, preferred_element_type=jnp.float32)

    def bn_relu(y, g, b):
        mean = jnp.mean(y, axis=(0, 1, 2), keepdims=True)
        var = jnp.mean((y - mean) ** 2, axis=(0, 1, 2), keepdims=True)
        return jnp.maximum((y - mean) * lax.rsqrt(var + EPS) * g + b, 0.0)

    x = jnp.transpose(x_nchw, (0, 2, 3, 1))
    y = bn_relu(conv(x, w1_hwio), g1, b1)
    y = bn_relu(conv(y, w2_hwio), g2, b2)
    return jnp.transpose(y, (0, 3, 1, 2))


if __name__ == "__main__":
    N, Cin, Cout, H, W = 2, 4, 8, 16, 16

    key = jax.random.PRNGKey(0)
    k = jax.random.split(key, 7)
    x = jax.random.normal(k[0], (N, Cin, H, W), jnp.float32)
    w1 = jax.random.normal(k[1], (3, 3, Cin, Cout), jnp.float32) * 0.1   # HWIO
    w2 = jax.random.normal(k[2], (3, 3, Cout, Cout), jnp.float32) * 0.1  # HWIO
    g1 = 1.0 + 0.1 * jax.random.normal(k[3], (Cout,), jnp.float32)
    b1 = 0.1 * jax.random.normal(k[4], (Cout,), jnp.float32)
    g2 = 1.0 + 0.1 * jax.random.normal(k[5], (Cout,), jnp.float32)
    b2 = 0.1 * jax.random.normal(k[6], (Cout,), jnp.float32)

    out = jax.block_until_ready(jax.jit(double_conv)(x, w1, g1, b1, w2, g2, b2))
    ref = jax.block_until_ready(_reference(x, w1, g1, b1, w2, g2, b2))

    assert out.shape == (N, Cout, H, W)
    assert out.dtype == jnp.float32
    assert jnp.allclose(out, ref, rtol=5e-3, atol=5e-3), float(jnp.max(jnp.abs(out - ref)))
    print("KERNEL_OK")
</pallas_src>

<mosaic_0001>
module attributes {stable_mosaic.version = 11 : i64} {
  func.func @_conv3x3_stats_kernel(%arg0: i32, %arg1: memref<1x10x18x4xbf16, #tpu.memory_space<vmem>>, %arg2: memref<36x8xbf16, #tpu.memory_space<vmem>>, %arg3: memref<1x128x8xf32, #tpu.memory_space<vmem>>, %arg4: memref<1x2x8xf32, #tpu.memory_space<vmem>>) attributes {dimension_semantics = [#tpu.dimension_semantics<parallel>], iteration_bounds = array<i64: 4>, scalar_prefetch = 0 : i64, scratch_operands = 0 : i64, tpu.core_type = #tpu.core_type<tc>, window_params = [{transform_indices = @transform_0, window_bounds = array<i64: 1, 10, 18, 4>}, {pipeline_mode = #tpu.pipeline_mode<synchronous>, transform_indices = @transform_1, window_bounds = array<i64: 36, 8>}, {transform_indices = @transform_2, window_bounds = array<i64: 1, 128, 8>}, {transform_indices = @transform_3, window_bounds = array<i64: 1, 2, 8>}]} {
    %c0 = arith.constant 0 : index
    %c0_0 = arith.constant 0 : index
    %c0_1 = arith.constant 0 : index
    %c0_2 = arith.constant 0 : index
    %0 = vector.load %arg1[%c0, %c0_0, %c0_1, %c0_2] : memref<1x10x18x4xbf16, #tpu.memory_space<vmem>>, vector<1x10x18x4xbf16>
    %1 = vector.shape_cast %0 : vector<1x10x18x4xbf16> to vector<10x18x4xbf16>
    %2 = vector.extract_strided_slice %1 {offsets = [0, 0, 0], sizes = [8, 16, 4], strides = [1, 1, 1]} : vector<10x18x4xbf16> to vector<8x16x4xbf16>
    %3 = vector.shape_cast %2 : vector<8x16x4xbf16> to vector<128x4xbf16>
    %4 = vector.extract_strided_slice %1 {offsets = [0, 1, 0], sizes = [8, 16, 4], strides = [1, 1, 1]} : vector<10x18x4xbf16> to vector<8x16x4xbf16>
    %5 = vector.shape_cast %4 : vector<8x16x4xbf16> to vector<128x4xbf16>
    %6 = vector.extract_strided_slice %1 {offsets = [0, 2, 0], sizes = [8, 16, 4], strides = [1, 1, 1]} : vector<10x18x4xbf16> to vector<8x16x4xbf16>
    %7 = vector.shape_cast %6 : vector<8x16x4xbf16> to vector<128x4xbf16>
    %8 = vector.extract_strided_slice %1 {offsets = [1, 0, 0], sizes = [8, 16, 4], strides = [1, 1, 1]} : vector<10x18x4xbf16> to vector<8x16x4xbf16>
    %9 = vector.shape_cast %8 : vector<8x16x4xbf16> to vector<128x4xbf16>
    %10 = vector.extract_strided_slice %1 {offsets = [1, 1, 0], sizes = [8, 16, 4], strides = [1, 1, 1]} : vector<10x18x4xbf16> to vector<8x16x4xbf16>
    %11 = vector.shape_cast %10 : vector<8x16x4xbf16> to vector<128x4xbf16>
    %12 = vector.extract_strided_slice %1 {offsets = [1, 2, 0], sizes = [8, 16, 4], strides = [1, 1, 1]} : vector<10x18x4xbf16> to vector<8x16x4xbf16>
    %13 = vector.shape_cast %12 : vector<8x16x4xbf16> to vector<128x4xbf16>
    %14 = vector.extract_strided_slice %1 {offsets = [2, 0, 0], sizes = [8, 16, 4], strides = [1, 1, 1]} : vector<10x18x4xbf16> to vector<8x16x4xbf16>
    %15 = vector.shape_cast %14 : vector<8x16x4xbf16> to vector<128x4xbf16>
    %16 = vector.extract_strided_slice %1 {offsets = [2, 1, 0], sizes = [8, 16, 4], strides = [1, 1, 1]} : vector<10x18x4xbf16> to vector<8x16x4xbf16>
    %17 = vector.shape_cast %16 : vector<8x16x4xbf16> to vector<128x4xbf16>
    %18 = vector.extract_strided_slice %1 {offsets = [2, 2, 0], sizes = [8, 16, 4], strides = [1, 1, 1]} : vector<10x18x4xbf16> to vector<8x16x4xbf16>
    %19 = vector.shape_cast %18 : vector<8x16x4xbf16> to vector<128x4xbf16>
    %20 = tpu.concatenate %3, %5, %7, %9, %11, %13, %15, %17, %19 in 1 : vector<128x4xbf16>, vector<128x4xbf16>, vector<128x4xbf16>, vector<128x4xbf16>, vector<128x4xbf16>, vector<128x4xbf16>, vector<128x4xbf16>, vector<128x4xbf16>, vector<128x4xbf16> -> vector<128x36xbf16>
    %c0_3 = arith.constant 0 : index
    %c0_4 = arith.constant 0 : index
    %21 = vector.load %arg2[%c0_3, %c0_4] : memref<36x8xbf16, #tpu.memory_space<vmem>>, vector<36x8xbf16>
    %cst = arith.constant dense<0.000000e+00> : vector<128x8xf32>
    %22 = tpu.matmul %20, %21, %cst {dimension_numbers = #tpu.dot_dimension_numbers<[1], [0], [0], [1], [0, 0, 1, 1], [], []>} : vector<128x36xbf16>, vector<36x8xbf16>, vector<128x8xf32> -> vector<128x8xf32>
    %c0_5 = arith.constant 0 : index
    %c0_6 = arith.constant 0 : index
    %c0_7 = arith.constant 0 : index
    %23 = vector.load %arg3[%c0_5, %c0_6, %c0_7] : memref<1x128x8xf32, #tpu.memory_space<vmem>>, vector<1x128x8xf32>
    %24 = vector.shape_cast %23 : vector<1x128x8xf32> to vector<128x8xf32>
    %25 = vector.shape_cast %22 : vector<128x8xf32> to vector<1x128x8xf32>
    tpu.vector_store %arg3[%c0_5, %c0_6, %c0_7], %25 {strides = array<i32>} : memref<1x128x8xf32, #tpu.memory_space<vmem>>, vector<1x128x8xf32>,
    %cst_8 = arith.constant dense<0.000000e+00> : vector<8xf32>
    %26 = vector.multi_reduction <add>, %22, %cst_8 [0] : vector<128x8xf32> to vector<8xf32>
    %27 = vector.shape_cast %26 : vector<8xf32> to vector<1x8xf32>
    %28 = arith.mulf %22, %22 : vector<128x8xf32>
    %cst_9 = arith.constant dense<0.000000e+00> : vector<8xf32>
    %29 = vector.multi_reduction <add>, %28, %cst_9 [0] : vector<128x8xf32> to vector<8xf32>
    %30 = vector.shape_cast %29 : vector<8xf32> to vector<1x8xf32>
    %31 = tpu.concatenate %27, %30 in 0 : vector<1x8xf32>, vector<1x8xf32> -> vector<2x8xf32>
    %c0_10 = arith.constant 0 : index
    %c0_11 = arith.constant 0 : index
    %c0_12 = arith.constant 0 : index
    %32 = vector.load %arg4[%c0_10, %c0_11, %c0_12] : memref<1x2x8xf32, #tpu.memory_space<vmem>>, vector<1x2x8xf32>
    %33 = vector.shape_cast %32 : vector<1x2x8xf32> to vector<2x8xf32>
    %34 = vector.shape_cast %31 : vector<2x8xf32> to vector<1x2x8xf32>
    tpu.vector_store %arg4[%c0_10, %c0_11, %c0_12], %34 {strides = array<i32>} : memref<1x2x8xf32, #tpu.memory_space<vmem>>, vector<1x2x8xf32>,
    return
  }
  func.func @transform_0(%arg0: i32) -> (i32, i32, i32, i32) {
    %c0_i32 = arith.constant 0 : i32
    %c0_i32_0 = arith.constant 0 : i32
    %c0_i32_1 = arith.constant 0 : i32
    %c0_i32_2 = arith.constant 0 : i32
    return %arg0, %c0_i32, %c0_i32_0, %c0_i32_1 : i32, i32, i32, i32
  }
  func.func @transform_1(%arg0: i32) -> (i32, i32) {
    %c0_i32 = arith.constant 0 : i32
    %c0_i32_0 = arith.constant 0 : i32
    %c0_i32_1 = arith.constant 0 : i32
    return %c0_i32, %c0_i32_0 : i32, i32
  }
  func.func @transform_2(%arg0: i32) -> (i32, i32, i32) {
    %c0_i32 = arith.constant 0 : i32
    %c0_i32_0 = arith.constant 0 : i32
    %c0_i32_1 = arith.constant 0 : i32
    return %arg0, %c0_i32, %c0_i32_0 : i32, i32, i32
  }
  func.func @transform_3(%arg0: i32) -> (i32, i32, i32) {
    %c0_i32 = arith.constant 0 : i32
    %c0_i32_0 = arith.constant 0 : i32
    %c0_i32_1 = arith.constant 0 : i32
    return %arg0, %c0_i32, %c0_i32_0 : i32, i32, i32
  }
}

module attributes {stable_mosaic.version = 11 : i64} {
  func.func @_bn_relu_kernel(%arg0: i32, %arg1: memref<32x128xf32, #tpu.memory_space<vmem>>, %arg2: memref<1x128xf32, #tpu.memory_space<vmem>>, %arg3: memref<1x128xf32, #tpu.memory_space<vmem>>, %arg4: memref<32x128xbf16, #tpu.memory_space<vmem>>) attributes {dimension_semantics = [#tpu.dimension_semantics<parallel>], iteration_bounds = array<i64: 1>, scalar_prefetch = 0 : i64, scratch_operands = 0 : i64, tpu.core_type = #tpu.core_type<tc>, window_params = [{transform_indices = @transform_0, window_bounds = array<i64: 32, 128>}, {pipeline_mode = #tpu.pipeline_mode<synchronous>, transform_indices = @transform_1, window_bounds = array<i64: 1, 128>}, {pipeline_mode = #tpu.pipeline_mode<synchronous>, transform_indices = @transform_2, window_bounds = array<i64: 1, 128>}, {transform_indices = @transform_3, window_bounds = array<i64: 32, 128>}]} {
    %c0 = arith.constant 0 : index
    %c0_0 = arith.constant 0 : index
    %0 = vector.load %arg1[%c0, %c0_0] : memref<32x128xf32, #tpu.memory_space<vmem>>, vector<32x128xf32>
    %c0_1 = arith.constant 0 : index
    %c0_2 = arith.constant 0 : index
    %1 = vector.load %arg2[%c0_1, %c0_2] : memref<1x128xf32, #tpu.memory_space<vmem>>, vector<1x128xf32>
    %2 = vector.broadcast %1 : vector<1x128xf32> to vector<32x128xf32>
    %3 = arith.mulf %0, %2 : vector<32x128xf32>
    %c0_3 = arith.constant 0 : index
    %c0_4 = arith.constant 0 : index
    %4 = vector.load %arg3[%c0_3, %c0_4] : memref<1x128xf32, #tpu.memory_space<vmem>>, vector<1x128xf32>
    %5 = vector.broadcast %4 : vector<1x128xf32> to vector<32x128xf32>
    %6 = arith.addf %3, %5 : vector<32x128xf32>
    %cst = arith.constant 0.000000e+00 : f32
    %7 = vector.broadcast %cst : f32 to vector<32x128xf32>
    %8 = arith.maximumf %6, %7 : vector<32x128xf32>
    %9 = arith.truncf %8 : vector<32x128xf32> to vector<32x128xbf16>
    %c0_5 = arith.constant 0 : index
    %c0_6 = arith.constant 0 : index
    %10 = vector.load %arg4[%c0_5, %c0_6] : memref<32x128xbf16, #tpu.memory_space<vmem>>, vector<32x128xbf16>
    tpu.vector_store %arg4[%c0_5, %c0_6], %9 {strides = array<i32>} : memref<32x128xbf16, #tpu.memory_space<vmem>>, vector<32x128xbf16>,
    return
  }
  func.func @transform_0(%arg0: i32) -> (i32, i32) {
    %c0_i32 = arith.constant 0 : i32
    %c0_i32_0 = arith.constant 0 : i32
    return %arg0, %c0_i32 : i32, i32
  }
  func.func @transform_1(%arg0: i32) -> (i32, i32) {
    %c0_i32 = arith.constant 0 : i32
    %c0_i32_0 = arith.constant 0 : i32
    %c0_i32_1 = arith.constant 0 : i32
    return %c0_i32, %c0_i32_0 : i32, i32
  }
  func.func @transform_2(%arg0: i32) -> (i32, i32) {
    %c0_i32 = arith.constant 0 : i32
    %c0_i32_0 = arith.constant 0 : i32
    %c0_i32_1 = arith.constant 0 : i32
    return %c0_i32, %c0_i32_0 : i32, i32
  }
  func.func @transform_3(%arg0: i32) -> (i32, i32) {
    %c0_i32 = arith.constant 0 : i32
    %c0_i32_0 = arith.constant 0 : i32
    return %arg0, %c0_i32 : i32, i32
  }
}

module attributes {stable_mosaic.version = 11 : i64} {
  func.func @_conv3x3_stats_kernel(%arg0: i32, %arg1: memref<1x10x18x8xbf16, #tpu.memory_space<vmem>>, %arg2: memref<72x8xbf16, #tpu.memory_space<vmem>>, %arg3: memref<1x128x8xf32, #tpu.memory_space<vmem>>, %arg4: memref<1x2x8xf32, #tpu.memory_space<vmem>>) attributes {dimension_semantics = [#tpu.dimension_semantics<parallel>], iteration_bounds = array<i64: 4>, scalar_prefetch = 0 : i64, scratch_operands = 0 : i64, tpu.core_type = #tpu.core_type<tc>, window_params = [{transform_indices = @transform_0, window_bounds = array<i64: 1, 10, 18, 8>}, {pipeline_mode = #tpu.pipeline_mode<synchronous>, transform_indices = @transform_1, window_bounds = array<i64: 72, 8>}, {transform_indices = @transform_2, window_bounds = array<i64: 1, 128, 8>}, {transform_indices = @transform_3, window_bounds = array<i64: 1, 2, 8>}]} {
    %c0 = arith.constant 0 : index
    %c0_0 = arith.constant 0 : index
    %c0_1 = arith.constant 0 : index
    %c0_2 = arith.constant 0 : index
    %0 = vector.load %arg1[%c0, %c0_0, %c0_1, %c0_2] : memref<1x10x18x8xbf16, #tpu.memory_space<vmem>>, vector<1x10x18x8xbf16>
    %1 = vector.shape_cast %0 : vector<1x10x18x8xbf16> to vector<10x18x8xbf16>
    %2 = vector.extract_strided_slice %1 {offsets = [0, 0, 0], sizes = [8, 16, 8], strides = [1, 1, 1]} : vector<10x18x8xbf16> to vector<8x16x8xbf16>
    %3 = vector.shape_cast %2 : vector<8x16x8xbf16> to vector<128x8xbf16>
    %4 = vector.extract_strided_slice %1 {offsets = [0, 1, 0], sizes = [8, 16, 8], strides = [1, 1, 1]} : vector<10x18x8xbf16> to vector<8x16x8xbf16>
    %5 = vector.shape_cast %4 : vector<8x16x8xbf16> to vector<128x8xbf16>
    %6 = vector.extract_strided_slice %1 {offsets = [0, 2, 0], sizes = [8, 16, 8], strides = [1, 1, 1]} : vector<10x18x8xbf16> to vector<8x16x8xbf16>
    %7 = vector.shape_cast %6 : vector<8x16x8xbf16> to vector<128x8xbf16>
    %8 = vector.extract_strided_slice %1 {offsets = [1, 0, 0], sizes = [8, 16, 8], strides = [1, 1, 1]} : vector<10x18x8xbf16> to vector<8x16x8xbf16>
    %9 = vector.shape_cast %8 : vector<8x16x8xbf16> to vector<128x8xbf16>
    %10 = vector.extract_strided_slice %1 {offsets = [1, 1, 0], sizes = [8, 16, 8], strides = [1, 1, 1]} : vector<10x18x8xbf16> to vector<8x16x8xbf16>
    %11 = vector.shape_cast %10 : vector<8x16x8xbf16> to vector<128x8xbf16>
    %12 = vector.extract_strided_slice %1 {offsets = [1, 2, 0], sizes = [8, 16, 8], strides = [1, 1, 1]} : vector<10x18x8xbf16> to vector<8x16x8xbf16>
    %13 = vector.shape_cast %12 : vector<8x16x8xbf16> to vector<128x8xbf16>
    %14 = vector.extract_strided_slice %1 {offsets = [2, 0, 0], sizes = [8, 16, 8], strides = [1, 1, 1]} : vector<10x18x8xbf16> to vector<8x16x8xbf16>
    %15 = vector.shape_cast %14 : vector<8x16x8xbf16> to vector<128x8xbf16>
    %16 = vector.extract_strided_slice %1 {offsets = [2, 1, 0], sizes = [8, 16, 8], strides = [1, 1, 1]} : vector<10x18x8xbf16> to vector<8x16x8xbf16>
    %17 = vector.shape_cast %16 : vector<8x16x8xbf16> to vector<128x8xbf16>
    %18 = vector.extract_strided_slice %1 {offsets = [2, 2, 0], sizes = [8, 16, 8], strides = [1, 1, 1]} : vector<10x18x8xbf16> to vector<8x16x8xbf16>
    %19 = vector.shape_cast %18 : vector<8x16x8xbf16> to vector<128x8xbf16>
    %20 = tpu.concatenate %3, %5, %7, %9, %11, %13, %15, %17, %19 in 1 : vector<128x8xbf16>, vector<128x8xbf16>, vector<128x8xbf16>, vector<128x8xbf16>, vector<128x8xbf16>, vector<128x8xbf16>, vector<128x8xbf16>, vector<128x8xbf16>, vector<128x8xbf16> -> vector<128x72xbf16>
    %c0_3 = arith.constant 0 : index
    %c0_4 = arith.constant 0 : index
    %21 = vector.load %arg2[%c0_3, %c0_4] : memref<72x8xbf16, #tpu.memory_space<vmem>>, vector<72x8xbf16>
    %cst = arith.constant dense<0.000000e+00> : vector<128x8xf32>
    %22 = tpu.matmul %20, %21, %cst {dimension_numbers = #tpu.dot_dimension_numbers<[1], [0], [0], [1], [0, 0, 1, 1], [], []>} : vector<128x72xbf16>, vector<72x8xbf16>, vector<128x8xf32> -> vector<128x8xf32>
    %c0_5 = arith.constant 0 : index
    %c0_6 = arith.constant 0 : index
    %c0_7 = arith.constant 0 : index
    %23 = vector.load %arg3[%c0_5, %c0_6, %c0_7] : memref<1x128x8xf32, #tpu.memory_space<vmem>>, vector<1x128x8xf32>
    %24 = vector.shape_cast %23 : vector<1x128x8xf32> to vector<128x8xf32>
    %25 = vector.shape_cast %22 : vector<128x8xf32> to vector<1x128x8xf32>
    tpu.vector_store %arg3[%c0_5, %c0_6, %c0_7], %25 {strides = array<i32>} : memref<1x128x8xf32, #tpu.memory_space<vmem>>, vector<1x128x8xf32>,
    %cst_8 = arith.constant dense<0.000000e+00> : vector<8xf32>
    %26 = vector.multi_reduction <add>, %22, %cst_8 [0] : vector<128x8xf32> to vector<8xf32>
    %27 = vector.shape_cast %26 : vector<8xf32> to vector<1x8xf32>
    %28 = arith.mulf %22, %22 : vector<128x8xf32>
    %cst_9 = arith.constant dense<0.000000e+00> : vector<8xf32>
    %29 = vector.multi_reduction <add>, %28, %cst_9 [0] : vector<128x8xf32> to vector<8xf32>
    %30 = vector.shape_cast %29 : vector<8xf32> to vector<1x8xf32>
    %31 = tpu.concatenate %27, %30 in 0 : vector<1x8xf32>, vector<1x8xf32> -> vector<2x8xf32>
    %c0_10 = arith.constant 0 : index
    %c0_11 = arith.constant 0 : index
    %c0_12 = arith.constant 0 : index
    %32 = vector.load %arg4[%c0_10, %c0_11, %c0_12] : memref<1x2x8xf32, #tpu.memory_space<vmem>>, vector<1x2x8xf32>
    %33 = vector.shape_cast %32 : vector<1x2x8xf32> to vector<2x8xf32>
    %34 = vector.shape_cast %31 : vector<2x8xf32> to vector<1x2x8xf32>
    tpu.vector_store %arg4[%c0_10, %c0_11, %c0_12], %34 {strides = array<i32>} : memref<1x2x8xf32, #tpu.memory_space<vmem>>, vector<1x2x8xf32>,
    return
  }
  func.func @transform_0(%arg0: i32) -> (i32, i32, i32, i32) {
    %c0_i32 = arith.constant 0 : i32
    %c0_i32_0 = arith.constant 0 : i32
    %c0_i32_1 = arith.constant 0 : i32
    %c0_i32_2 = arith.constant 0 : i32
    return %arg0, %c0_i32, %c0_i32_0, %c0_i32_1 : i32, i32, i32, i32
  }
  func.func @transform_1(%arg0: i32) -> (i32, i32) {
    %c0_i32 = arith.constant 0 : i32
    %c0_i32_0 = arith.constant 0 : i32
    %c0_i32_1 = arith.constant 0 : i32
    return %c0_i32, %c0_i32_0 : i32, i32
  }
  func.func @transform_2(%arg0: i32) -> (i32, i32, i32) {
    %c0_i32 = arith.constant 0 : i32
    %c0_i32_0 = arith.constant 0 : i32
    %c0_i32_1 = arith.constant 0 : i32
    return %arg0, %c0_i32, %c0_i32_0 : i32, i32, i32
  }
  func.func @transform_3(%arg0: i32) -> (i32, i32, i32) {
    %c0_i32 = arith.constant 0 : i32
    %c0_i32_0 = arith.constant 0 : i32
    %c0_i32_1 = arith.constant 0 : i32
    return %arg0, %c0_i32, %c0_i32_0 : i32, i32, i32
  }
}

module attributes {stable_mosaic.version = 11 : i64} {
  func.func @_bn_relu_kernel(%arg0: i32, %arg1: memref<32x128xf32, #tpu.memory_space<vmem>>, %arg2: memref<1x128xf32, #tpu.memory_space<vmem>>, %arg3: memref<1x128xf32, #tpu.memory_space<vmem>>, %arg4: memref<32x128xf32, #tpu.memory_space<vmem>>) attributes {dimension_semantics = [#tpu.dimension_semantics<parallel>], iteration_bounds = array<i64: 1>, scalar_prefetch = 0 : i64, scratch_operands = 0 : i64, tpu.core_type = #tpu.core_type<tc>, window_params = [{transform_indices = @transform_0, window_bounds = array<i64: 32, 128>}, {pipeline_mode = #tpu.pipeline_mode<synchronous>, transform_indices = @transform_1, window_bounds = array<i64: 1, 128>}, {pipeline_mode = #tpu.pipeline_mode<synchronous>, transform_indices = @transform_2, window_bounds = array<i64: 1, 128>}, {transform_indices = @transform_3, window_bounds = array<i64: 32, 128>}]} {
    %c0 = arith.constant 0 : index
    %c0_0 = arith.constant 0 : index
    %0 = vector.load %arg1[%c0, %c0_0] : memref<32x128xf32, #tpu.memory_space<vmem>>, vector<32x128xf32>
    %c0_1 = arith.constant 0 : index
    %c0_2 = arith.constant 0 : index
    %1 = vector.load %arg2[%c0_1, %c0_2] : memref<1x128xf32, #tpu.memory_space<vmem>>, vector<1x128xf32>
    %2 = vector.broadcast %1 : vector<1x128xf32> to vector<32x128xf32>
    %3 = arith.mulf %0, %2 : vector<32x128xf32>
    %c0_3 = arith.constant 0 : index
    %c0_4 = arith.constant 0 : index
    %4 = vector.load %arg3[%c0_3, %c0_4] : memref<1x128xf32, #tpu.memory_space<vmem>>, vector<1x128xf32>
    %5 = vector.broadcast %4 : vector<1x128xf32> to vector<32x128xf32>
    %6 = arith.addf %3, %5 : vector<32x128xf32>
    %cst = arith.constant 0.000000e+00 : f32
    %7 = vector.broadcast %cst : f32 to vector<32x128xf32>
    %8 = arith.maximumf %6, %7 : vector<32x128xf32>
    %c0_5 = arith.constant 0 : index
    %c0_6 = arith.constant 0 : index
    %9 = vector.load %arg4[%c0_5, %c0_6] : memref<32x128xf32, #tpu.memory_space<vmem>>, vector<32x128xf32>
    tpu.vector_store %arg4[%c0_5, %c0_6], %8 {strides = array<i32>} : memref<32x128xf32, #tpu.memory_space<vmem>>, vector<32x128xf32>,
    return
  }
  func.func @transform_0(%arg0: i32) -> (i32, i32) {
    %c0_i32 = arith.constant 0 : i32
    %c0_i32_0 = arith.constant 0 : i32
    return %arg0, %c0_i32 : i32, i32
  }
  func.func @transform_1(%arg0: i32) -> (i32, i32) {
    %c0_i32 = arith.constant 0 : i32
    %c0_i32_0 = arith.constant 0 : i32
    %c0_i32_1 = arith.constant 0 : i32
    return %c0_i32, %c0_i32_0 : i32, i32
  }
  func.func @transform_2(%arg0: i32) -> (i32, i32) {
    %c0_i32 = arith.constant 0 : i32
    %c0_i32_0 = arith.constant 0 : i32
    %c0_i32_1 = arith.constant 0 : i32
    return %c0_i32, %c0_i32_0 : i32, i32
  }
  func.func @transform_3(%arg0: i32) -> (i32, i32) {
    %c0_i32 = arith.constant 0 : i32
    %c0_i32_0 = arith.constant 0 : i32
    return %arg0, %c0_i32 : i32, i32
  }
}

</mosaic_0001>

<llo_original>
// kernel: tile.24
$region0: #{tile.24}
  %s0 = inlined_call_operand.vmem [shape: f32[16,8], index: 0, kind: input, shape index: {}]
  %s1 = inlined_call_operand.vmem [shape: f32[1,128], index: 1, kind: output, shape index: {}]
  $region1: #{tile.24} parent=0
    #allocation0 [shape = 'u8[4096]{0}', space=vmem, size = 0x1000, scoped, tag = 'scoped mem for output reshape']
    %v2 = vld [vmem:[%s0] sm:$0x1]
    %vm3 = vcmask 64512
    %4 = vst.msk [vmem:[#allocation0] sm:$0x1] %vm3, %v2
    %s5 = scalar_lea.vmem %s0, 15
    %v6 = vld [vmem:[%s5] sm:$0x1]
    %7 = vrot.lane.b32.xlu0 %v6, 120
    %v8 = vpop.permute.xlu0 %7
    %vm9 = vcmask 1048512
    %10 = vst.msk [vmem:[#allocation0] sm:$0x1] %vm9, %v8
    %s11 = scalar_lea.vmem %s0, 14
    %v12 = vld [vmem:[%s11] sm:$0x1]
    %13 = vrot.lane.b32.xlu0 %v12, 112
    %v14 = vpop.permute.xlu0 %13
    %vm15 = vcmask 982912
    %16 = vst.msk [vmem:[#allocation0] sm:$0x1] %vm15, %v14
    %s17 = scalar_lea.vmem %s0, 13
    %v18 = vld [vmem:[%s17] sm:$0x1]
    %19 = vrot.lane.b32.xlu0 %v18, 104
    %v20 = vpop.permute.xlu0 %19
    %vm21 = vcmask 917312
    %22 = vst.msk [vmem:[#allocation0] sm:$0x1] %vm21, %v20
    %s23 = scalar_lea.vmem %s0, 12
    %v24 = vld [vmem:[%s23] sm:$0x1]
    %25 = vrot.lane.b32.xlu0 %v24, 96
    %v26 = vpop.permute.xlu0 %25
    %vm27 = vcmask 851712
    %28 = vst.msk [vmem:[#allocation0] sm:$0x1] %vm27, %v26
    %s29 = scalar_lea.vmem %s0, 11
    %v30 = vld [vmem:[%s29] sm:$0x1]
    %31 = vrot.lane.b32.xlu0 %v30, 88
    %v32 = vpop.permute.xlu0 %31
    %vm33 = vcmask 786112
    %34 = vst.msk [vmem:[#allocation0] sm:$0x1] %vm33, %v32
    %s35 = scalar_lea.vmem %s0, 10
    %v36 = vld [vmem:[%s35] sm:$0x1]
    %37 = vrot.lane.b32.xlu0 %v36, 80
    %v38 = vpop.permute.xlu0 %37
    %vm39 = vcmask 720512
    %40 = vst.msk [vmem:[#allocation0] sm:$0x1] %vm39, %v38
    %s41 = scalar_lea.vmem %s0, 9
    %v42 = vld [vmem:[%s41] sm:$0x1]
    %43 = vrot.lane.b32.xlu0 %v42, 72
    %v44 = vpop.permute.xlu0 %43
    %vm45 = vcmask 654912
    %46 = vst.msk [vmem:[#allocation0] sm:$0x1] %vm45, %v44
    %s47 = scalar_lea.vmem %s0, 8
    %v48 = vld [vmem:[%s47] sm:$0x1]
    %49 = vrot.lane.b32.xlu0 %v48, 64
    %v50 = vpop.permute.xlu0 %49
    %vm51 = vcmask 589312
    %52 = vst.msk [vmem:[#allocation0] sm:$0x1] %vm51, %v50
    %s53 = scalar_lea.vmem %s0, 7
    %v54 = vld [vmem:[%s53] sm:$0x1]
    %55 = vrot.lane.b32.xlu0 %v54, 56
    %v56 = vpop.permute.xlu0 %55
    %vm57 = vcmask 523712
    %58 = vst.msk [vmem:[#allocation0] sm:$0x1] %vm57, %v56
    %s59 = scalar_lea.vmem %s0, 6
    %v60 = vld [vmem:[%s59] sm:$0x1]
    %61 = vrot.lane.b32.xlu0 %v60, 48
    %v62 = vpop.permute.xlu0 %61
    %vm63 = vcmask 458112
    %64 = vst.msk [vmem:[#allocation0] sm:$0x1] %vm63, %v62
    %s65 = scalar_lea.vmem %s0, 5
    %v66 = vld [vmem:[%s65] sm:$0x1]
    %67 = vrot.lane.b32.xlu0 %v66, 40
    %v68 = vpop.permute.xlu0 %67
    %vm69 = vcmask 392512
    %70 = vst.msk [vmem:[#allocation0] sm:$0x1] %vm69, %v68
    %s71 = scalar_lea.vmem %s0, 4
    %v72 = vld [vmem:[%s71] sm:$0x1]
    %73 = vrot.lane.b32.xlu0 %v72, 32
    %v74 = vpop.permute.xlu0 %73
    %vm75 = vcmask 326912
    %76 = vst.msk [vmem:[#allocation0] sm:$0x1] %vm75, %v74
    %s77 = scalar_lea.vmem %s0, 3
    %v78 = vld [vmem:[%s77] sm:$0x1]
    %79 = vrot.lane.b32.xlu0 %v78, 24
    %v80 = vpop.permute.xlu0 %79
    %vm81 = vcmask 261312
    %82 = vst.msk [vmem:[#allocation0] sm:$0x1] %vm81, %v80
    %s83 = scalar_lea.vmem %s0, 2
    %v84 = vld [vmem:[%s83] sm:$0x1]
    %85 = vrot.lane.b32.xlu0 %v84, 16
    %v86 = vpop.permute.xlu0 %85
    %vm87 = vcmask 195712
    %88 = vst.msk [vmem:[#allocation0] sm:$0x1] %vm87, %v86
    %s89 = scalar_lea.vmem %s0, 1
    %v90 = vld [vmem:[%s89] sm:$0x1]
    %91 = vrot.lane.b32.xlu0 %v90, 8
    %v92 = vpop.permute.xlu0 %91
    %vm93 = vcmask 130112
    %94 = vst.msk [vmem:[#allocation0] sm:$0x1] %vm93, %v92
    %s96 = ssub.s32 2, 1
    %v97 = vld [vmem:[#allocation0] sm:%s96]
    %s99 = ssub.s32 2, 1
    %100 = vst [vmem:[%s1] sm:%s99] %v97

// kernel: tile.23
$region0: #{tile.23}
  #allocation0 [shape = 's32[1]{0}', space=sflag, size = 0x4, scoped, tag = 'scoped memory for tile.23']
  %s0 = inlined_call_operand.vmem [shape: f32[8], index: 0, kind: input, shape index: {}]
  %s1 = inlined_call_operand.vmem [shape: f32[16,8], index: 1, kind: output, shape index: {}]
  // Predicated region
  $region2: #{tile.23} parent=0 // pred_check
    _
  $region3: #{tile.23} parent=0 // pred_check_branch
    %3 = sbr.rel (0) target = $region5
  $region4: #{tile.23} parent=0 // pred_region
    _
  $region5: #{tile.23} parent=0 // pred_fallthru
    _
  %v4 = vld [vmem:[%s0] ss:$0 sm:$0xff]
  %5 = vst [vmem:[%s1] sm:$0xff] %v4
  %s6 = scalar_lea.vmem %s1, 8
  %7 = vst [vmem:[%s6] sm:$0xff] %v4

// kernel: double_conv.5
$region0: #{double_conv.5}
  #allocation0 [shape = 'u32[]', space=smem, size = 0x4, offset = 0x4, fixed_abs, tag = 'smem constant byte address 0x4 - core index']
  #allocation1 [shape = 'u32[72,128]{1,0:T(1,128)}', space=vmem, size = 0x9000, scoped, tag = 'internal scratch']
  %s0 = inlined_call_operand.vmem [shape: f32[32,128], index: 0, kind: input, shape index: {}]
  %s1 = inlined_call_operand.vmem [shape: f32[1,128], index: 1, kind: input, shape index: {}]
  %s2 = inlined_call_operand.vmem [shape: f32[1,128], index: 2, kind: input, shape index: {}]
  %s3 = inlined_call_operand.vmem [shape: bf16[32,128], index: 3, kind: output, shape index: {}]
  %s4 = sld [smem:[#allocation0]]
  $region22: #{double_conv.5} parent=0
    _
  %s6 = ssub.s32 1, %s4
  %s7 = scalar_select 0, %s6, %s4
  // Predicated region
  $region2: #{double_conv.5} parent=0 // pred_check
    _
  $region3: #{double_conv.5} parent=0 // pred_check_branch
    %9 = sbr.rel (0) target = $region5
  $region4: #{double_conv.5} parent=0 // pred_region
    _
  $region5: #{double_conv.5} parent=0 // pred_fallthru
    _
  // Predicated region
  $region6: #{double_conv.5} parent=0 // pred_check
    _
  $region7: #{double_conv.5} parent=0 // pred_check_branch
    %11 = sbr.rel (0) target = $region9
  $region8: #{double_conv.5} parent=0 // pred_region
    _
  $region9: #{double_conv.5} parent=0 // pred_fallthru
    _
  // Predicated region
  $region10: #{double_conv.5} parent=0 // pred_check
    _
  $region11: #{double_conv.5} parent=0 // pred_check_branch
    %13 = sbr.rel (0) target = $region13
  $region12: #{double_conv.5} parent=0 // pred_region
    _
  $region13: #{double_conv.5} parent=0 // pred_fallthru
    _
  %v14 = vld [vmem:[%s0] sm:$0xff]
  %v15 = vld [vmem:[%s0 + $0x8] sm:$0xff]
  %v16 = vld [vmem:[%s0 + $0x10] sm:$0xff]
  %v17 = vld [vmem:[%s0 + $0x18] sm:$0xff]
  %v18 = vld [vmem:[%s1] sm:$0x1]
  %v20 = vperm.slane %v18, 0
  %v22 = vmul.f32 %v14, %v20
  %v23 = vmul.f32 %v15, %v20
  %v24 = vmul.f32 %v16, %v20
  %v25 = vmul.f32 %v17, %v20
  %v26 = vld [vmem:[%s2] sm:$0x1]
  %v28 = vperm.slane %v26, 0
  %v30 = vadd.f32 %v22, %v28
  %v31 = vadd.f32 %v23, %v28
  %v32 = vadd.f32 %v24, %v28
  %v33 = vadd.f32 %v25, %v28
  %v34 = vmax.f32 %v30, 0.0
  %v35 = vmax.f32 %v31, 0.0
  %v36 = vmax.f32 %v32, 0.0
  %v37 = vmax.f32 %v33, 0.0
  %v38 = vpack.c.bf16 %v34, %v34
  %v39 = vpack.c.bf16 %v35, %v35
  %v40 = vpack.c.bf16 %v36, %v36
  %v41 = vpack.c.bf16 %v37, %v37
  %42 = vst [vmem:[%s3] sm:$0xf] %v38
  %43 = vst [vmem:[%s3 + $0x4] sm:$0xf] %v39
  %44 = vst [vmem:[%s3 + $0x8] sm:$0xf] %v40
  %45 = vst [vmem:[%s3 + $0xc] sm:$0xf] %v41
  // Predicated region
  $region14: #{double_conv.5} parent=0 // pred_check
    _
  $region15: #{double_conv.5} parent=0 // pred_check_branch
    %47 = sbr.rel (0) target = $region17
  $region16: #{double_conv.5} parent=0 // pred_region
    _
  $region17: #{double_conv.5} parent=0 // pred_fallthru
    _
  // Predicated region
  $region18: #{double_conv.5} parent=0 // pred_check
    _
  $region19: #{double_conv.5} parent=0 // pred_check_branch
    %49 = sbr.rel (0) target = $region21
  $region20: #{double_conv.5} parent=0 // pred_region
    _
  $region21: #{double_conv.5} parent=0 // pred_fallthru
    _

// kernel: double_conv.4
$region0: #{double_conv.4}
  #allocation0 [shape = 'u32[]', space=smem, size = 0x4, offset = 0x4, fixed_abs, tag = 'smem constant byte address 0x4 - core index']
  #allocation1 [shape = 'u32[72,128]{1,0:T(1,128)}', space=vmem, size = 0x9000, scoped, tag = 'internal scratch']
  %s0 = inlined_call_operand.vmem [shape: bf16[4,10,18,4], index: 0, kind: input, shape index: {}]
  %s1 = inlined_call_operand.vmem [shape: bf16[36,8], index: 1, kind: input, shape index: {}]
  %s2 = inlined_call_operand.vmem [shape: f32[4,128,8], index: 2, kind: output, shape index: {0}]
  %s3 = inlined_call_operand.vmem [shape: f32[4,2,8], index: 3, kind: output, shape index: {1}]
  %4 = xla_tuple %s2, %s3
  %s5 = sld [smem:[#allocation0]]
  $region49: #{double_conv.4} parent=0
    _
  %s7 = ssub.s32 1, %s5
  %s8 = scalar_select 0, %s7, %s5
  loop: start=0, step=1, limit=6
  $region2: #{double_conv.4} parent=0 // loop_pre_header
    _
  $region3: #{double_conv.4} parent=0 // loop_header
    %s10 = sphi 0, %s14
    %p11 = scmp.ge.s32.totalorder %s10, 6
    %s20 = sphi 0, %s22
    %s23 = sphi 0, %s20
    %s24 = sphi 0, %s23
    %s40 = sphi 0, %s24
    %s44 = sphi 0, %s44
    %s46 = sphi 0, %s44
    %s47 = sphi 0, %s46
    %s61 = sphi 0, %s47
    %s67 = sphi 0, %s69
    %s70 = sphi 0, %s67
    %s71 = sphi 0, %s70
    %s87 = sphi 0, %s71
    %s93 = sphi 0, %s95
    %s96 = sphi 0, %s93
    %s97 = sphi 0, %s96
    %s113 = sphi 0, %s97
  $region4: #{double_conv.4} parent=0 // loop_header_branch
    %13 = sbr.rel (%p11) target = $region8
  $region5: #{double_conv.4} parent=0 // loop_body
    %s15 = ssub.s32 %s10, 1
    %s16 = ssub.s32 %s10, 2
    %s17 = sadd.s32 %s10, 1
    %s18 = ssub.s32 %s10, %s17
    %p19 = scmp.eq.s32.totalorder %s18, 0
    %s21 = sadd.s32 %s20, 1
    %s22 = scalar_select %p19, %s20, %s21
    %p25 = pneg %p19
    %p26 = scmp.eq.s32.totalorder %s10, 3
    %p27 = por %p25, %p26
    %p28 = scmp.ne.s32.totalorder %s20, %s23
    %p29 = scmp.eq.s32.totalorder %s10, 0
    %p30 = por %p28, %p29
    %p31 = scmp.ne.s32.totalorder %s20, %s23
    %p32 = scmp.eq.s32.totalorder %s15, 3
    %p33 = por %p31, %p32
    %p34 = scmp.ne.s32.totalorder %s23, %s24
    %p35 = scmp.eq.s32.totalorder %s15, 0
    %p36 = por %p34, %p35
    %p37 = scmp.ne.s32.totalorder %s23, %s24
    %p38 = scmp.eq.s32.totalorder %s16, 3
    %p39 = por %p37, %p38
    %p41 = scmp.ne.s32.totalorder %s24, %s40
    %p42 = scmp.eq.s32.totalorder %s16, 0
    %p43 = por %p41, %p42
    %s45 = sadd.s32 %s44, 1
    %p48 = scmp.eq.s32.totalorder %s10, 3
    %p49 = scmp.ne.s32.totalorder %s44, %s46
    %p50 = scmp.eq.s32.totalorder %s10, 0
    %p51 = por %p49, %p50
    %p52 = scmp.ne.s32.totalorder %s44, %s46
    %p53 = scmp.eq.s32.totalorder %s15, 3
    %p54 = por %p52, %p53
    %p55 = scmp.ne.s32.totalorder %s46, %s47
    %p56 = scmp.eq.s32.totalorder %s15, 0
    %p57 = por %p55, %p56
    %p58 = scmp.ne.s32.totalorder %s46, %s47
    %p59 = scmp.eq.s32.totalorder %s16, 3
    %p60 = por %p58, %p59
    %p62 = scmp.ne.s32.totalorder %s47, %s61
    %p63 = scmp.eq.s32.totalorder %s16, 0
    %p64 = por %p62, %p63
    %s65 = ssub.s32 %s10, %s17
    %p66 = scmp.eq.s32.totalorder %s65, 0
    %s68 = sadd.s32 %s67, 1
    %s69 = scalar_select %p66, %s67, %s68
    %p72 = pneg %p66
    %p73 = scmp.eq.s32.totalorder %s10, 3
    %p74 = por %p72, %p73
    %p75 = scmp.ne.s32.totalorder %s67, %s70
    %p76 = scmp.eq.s32.totalorder %s10, 0
    %p77 = por %p75, %p76
    %p78 = scmp.ne.s32.totalorder %s67, %s70
    %p79 = scmp.eq.s32.totalorder %s15, 3
    %p80 = por %p78, %p79
    %p81 = scmp.ne.s32.totalorder %s70, %s71
    %p82 = scmp.eq.s32.totalorder %s15, 0
    %p83 = por %p81, %p82
    %p84 = scmp.ne.s32.totalorder %s70, %s71
    %p85 = scmp.eq.s32.totalorder %s16, 3
    %p86 = por %p84, %p85
    %p88 = scmp.ne.s32.totalorder %s71, %s87
    %p89 = scmp.eq.s32.totalorder %s16, 0
    %p90 = por %p88, %p89
    %s91 = ssub.s32 %s10, %s17
    %p92 = scmp.eq.s32.totalorder %s91, 0
    %s94 = sadd.s32 %s93, 1
    %s95 = scalar_select %p92, %s93, %s94
    %p98 = pneg %p92
    %p99 = scmp.eq.s32.totalorder %s10, 3
    %p100 = por %p98, %p99
    %p101 = scmp.ne.s32.totalorder %s93, %s96
    %p102 = scmp.eq.s32.totalorder %s10, 0
    %p103 = por %p101, %p102
    %p104 = scmp.ne.s32.totalorder %s93, %s96
    %p105 = scmp.eq.s32.totalorder %s15, 3
    %p106 = por %p104, %p105
    %p107 = scmp.ne.s32.totalorder %s96, %s97
    %p108 = scmp.eq.s32.totalorder %s15, 0
    %p109 = por %p107, %p108
    %p110 = scmp.ne.s32.totalorder %s96, %s97
    %p111 = scmp.eq.s32.totalorder %s16, 3
    %p112 = por %p110, %p111
    %p114 = scmp.ne.s32.totalorder %s97, %s113
    %p115 = scmp.eq.s32.totalorder %s16, 0
    %p116 = por %p114, %p115
    %p117 = scmp.le.s32.totalorder 1, %s10
    %p118 = scmp.lt.s32.totalorder %s10, 5
    %p119 = pnand %p117, %p118
    %p120 = pneg %p119
    // Predicated region
    $region9: #{double_conv.4} parent=5 // pred_check
      _
    $region10: #{double_conv.4} parent=5 // pred_check_branch
      %122 = sbr.rel (%p119) target = $region12
    $region11: #{double_conv.4} parent=5 // pred_region
      %s123 = ssub.s32 %s10, 1
      // Predicated region
      $region13: #{double_conv.4} parent=11 // pred_check
        %p124 = pneg %p57
      $region14: #{double_conv.4} parent=11 // pred_check_branch
        %126 = sbr.rel (%p124) target = $region16
      $region15: #{double_conv.4} parent=11 // pred_region
        _
      $region16: #{double_conv.4} parent=11 // pred_fallthru
        _
    $region12: #{double_conv.4} parent=5 // pred_fallthru
      _
    %p127 = scmp.lt.s32.totalorder %s10, 4
    // Predicated region
    $region17: #{double_conv.4} parent=5 // pred_check
      %p128 = pneg %p127
    $region18: #{double_conv.4} parent=5 // pred_check_branch
      %130 = sbr.rel (%p128) target = $region20
    $region19: #{double_conv.4} parent=5 // pred_region
      // Predicated region
      $region21: #{double_conv.4} parent=19 // pred_check
        %p131 = pneg %p30
      $region22: #{double_conv.4} parent=19 // pred_check_branch
        %133 = sbr.rel (%p131) target = $region24
      $region23: #{double_conv.4} parent=19 // pred_region
        %p134 = scmp.lt.s32.totalorder %s10, 3
        %s135 = scalar_select %p134, %s10, 3
        %s136 = smul.addr %s135, 30
        %s137 = smul.addr %s136, 4
        %s138 = scalar_lea.vmem %s0, %s137
      $region24: #{double_conv.4} parent=19 // pred_fallthru
        _
    $region20: #{double_conv.4} parent=5 // pred_fallthru
      _
    %p139 = scmp.le.s32.totalorder 1, %s10
    %p140 = scmp.lt.s32.totalorder %s10, 5
    %p141 = pnand %p139, %p140
    %p142 = pneg %p141
    // Predicated region
    $region25: #{double_conv.4} parent=5 // pred_check
      _
    $region26: #{double_conv.4} parent=5 // pred_check_branch
      %144 = sbr.rel (%p141) target = $region28
    $region27: #{double_conv.4} parent=5 // pred_region
      %s145 = ssub.s32 %s10, 1
      %p146 = scmp.lt.s32.totalorder %s15, 3
      %s147 = scalar_select %p146, %s15, 3
      %s148 = smul.addr %s147, 30
      %s149 = smul.addr %s148, 4
      %s150 = scalar_lea.vmem %s0, %s149
      %p151 = pneg %p36
      %p152 = pneg %p33
      %p153 = pneg %p57
      %p154 = pneg %p54
      %p155 = pneg %p83
      %p156 = pneg %p80
      %p157 = scmp.lt.s32.totalorder %s15, 3
      %s158 = scalar_select %p157, %s15, 3
      %s159 = smul.addr %s158, 16
      %s160 = smul.addr %s159, 8
      %s161 = scalar_lea.vmem %s2, %s160
      %p162 = pneg %p109
      %p163 = pneg %p106
      %p164 = scmp.lt.s32.totalorder %s15, 3
      %s165 = scalar_select %p164, %s15, 3
      %s166 = smul.addr %s165, 2
      %s167 = scalar_lea.vmem %s3, %s166
      %p168 = scmp.lt.s32.totalorder %s15, 3
      %s169 = scalar_select %p168, %s15, 3
      %s170 = smul.addr %s169, 30
      %s171 = smul.addr %s170, 4
      %s172 = scalar_lea.vmem %s0, %s171
      %p173 = scmp.lt.s32.totalorder %s15, 3
      %s174 = scalar_select %p173, %s15, 3
      %s175 = smul.addr %s174, 16
      %s176 = smul.addr %s175, 8
      %s177 = scalar_lea.vmem %s2, %s176
      %p178 = scmp.lt.s32.totalorder %s15, 3
      %s179 = scalar_select %p178, %s15, 3
      %s180 = smul.addr %s179, 2
      %s181 = scalar_lea.vmem %s3, %s180
      %v183 = vld [vmem:[%s172] sm:$0xf]
      %v184 = vld [vmem:[%s172 + $0x4] sm:$0xf]
      %v185 = vld [vmem:[%s172 + $0x8] sm:$0x1]
      %v186 = vld [vmem:[%s172 + $0xc] sm:$0xf]
      %v187 = vld [vmem:[%s172 + $0x10] sm:$0xf]
      %v188 = vld [vmem:[%s172 + $0x14] sm:$0x1]
      %v189 = vld [vmem:[%s172 + $0x18] sm:$0xf]
      %v190 = vld [vmem:[%s172 + $0x1c] sm:$0xf]
      %v191 = vld [vmem:[%s172 + $0x20] sm:$0x1]
      %v192 = vld [vmem:[%s172 + $0x24] sm:$0xf]
      %v193 = vld [vmem:[%s172 + $0x28] sm:$0xf]
      %v194 = vld [vmem:[%s172 + $0x2c] sm:$0x1]
      %v195 = vld [vmem:[%s172 + $0x30] sm:$0xf]
      %v196 = vld [vmem:[%s172 + $0x34] sm:$0xf]
      %v197 = vld [vmem:[%s172 + $0x38] sm:$0x1]
      %v198 = vld [vmem:[%s172 + $0x3c] sm:$0xf]
      %v199 = vld [vmem:[%s172 + $0x40] sm:$0xf]
      %v200 = vld [vmem:[%s172 + $0x44] sm:$0x1]
      %v201 = vld [vmem:[%s172 + $0x48] sm:$0xf]
      %v202 = vld [vmem:[%s172 + $0x4c] sm:$0xf]
      %v203 = vld [vmem:[%s172 + $0x50] sm:$0x1]
      %v204 = vld [vmem:[%s172 + $0x54] sm:$0xf]
      %v205 = vld [vmem:[%s172 + $0x58] sm:$0xf]
      %v206 = vld [vmem:[%s172 + $0x5c] sm:$0x1]
      %v207 = vld [vmem:[%s172 + $0x60] sm:$0xf]
      %v208 = vld [vmem:[%s172 + $0x64] sm:$0xf]
      %v209 = vld [vmem:[%s172 + $0x68] sm:$0x1]
      %v210 = vld [vmem:[%s172 + $0x6c] sm:$0xf]
      %v211 = vld [vmem:[%s172 + $0x70] sm:$0xf]
      %v212 = vld [vmem:[%s172 + $0x74] sm:$0x1]
      %vm213 = vsmask.f32 3328
      %vm214 = vsmask.f32 7440
      %vm215 = vmor %vm213, %vm214
      %v217 = vshrl.u32 %v183, 16
      %v219 = vrot.slane %v217, 4
      %v220 = vshll.u32 %v183, 16
      %v222 = vrot.slane %v220, 5
      %v223 = vor.u32 %v219, %v222
      %v224 = vrot.slane %v223, 4
      %v226 = vshll.u32 %v184, 16
      %v228 = vrot.slane %v226, 5
      %v229 = vsel %vm215, %v224, %v228
      %v230 = vshrl.u32 %v184, 16
      %v232 = vrot.slane %v230, 4
      %v233 = vor.u32 %v232, %v228
      %v234 = vrot.slane %v233, 4
      %v236 = vshll.u32 %v185, 16
      %v238 = vrot.slane %v236, 5
      %v239 = vsel %vm215, %v234, %v238
      %v241 = vshrl.u32 %v186, 16
      %v243 = vrot.slane %v241, 4
      %v244 = vshll.u32 %v186, 16
      %v246 = vrot.slane %v244, 5
      %v247 = vor.u32 %v243, %v246
      %v248 = vrot.slane %v247, 4
      %v250 = vshll.u32 %v187, 16
      %v252 = vrot.slane %v250, 5
      %v253 = vsel %vm215, %v248, %v252
      %v254 = vshrl.u32 %v187, 16
      %v256 = vrot.slane %v254, 4
      %v257 = vor.u32 %v256, %v252
      %v258 = vrot.slane %v257, 4
      %v260 = vshll.u32 %v188, 16
      %v262 = vrot.slane %v260, 5
      %v263 = vsel %vm215, %v258, %v262
      %v265 = vshrl.u32 %v189, 16
      %v267 = vrot.slane %v265, 4
      %v268 = vshll.u32 %v189, 16
      %v270 = vrot.slane %v268, 5
      %v271 = vor.u32 %v267, %v270
      %v272 = vrot.slane %v271, 4
      %v274 = vshll.u32 %v190, 16
      %v276 = vrot.slane %v274, 5
      %v277 = vsel %vm215, %v272, %v276
      %v278 = vshrl.u32 %v190, 16
      %v280 = vrot.slane %v278, 4
      %v281 = vor.u32 %v280, %v276
      %v282 = vrot.slane %v281, 4
      %v284 = vshll.u32 %v191, 16
      %v286 = vrot.slane %v284, 5
      %v287 = vsel %vm215, %v282, %v286
      %v289 = vshrl.u32 %v192, 16
      %v291 = vrot.slane %v289, 4
      %v292 = vshll.u32 %v192, 16
      %v294 = vrot.slane %v292, 5
      %v295 = vor.u32 %v291, %v294
      %v296 = vrot.slane %v295, 4
      %v298 = vshll.u32 %v193, 16
      %v300 = vrot.slane %v298, 5
      %v301 = vsel %vm215, %v296, %v300
      %v302 = vshrl.u32 %v193, 16
      %v304 = vrot.slane %v302, 4
      %v305 = vor.u32 %v304, %v300
      %v306 = vrot.slane %v305, 4
      %v308 = vshll.u32 %v194, 16
      %v310 = vrot.slane %v308, 5
      %v311 = vsel %vm215, %v306, %v310
      %v313 = vshrl.u32 %v195, 16
      %v315 = vrot.slane %v313, 4
      %v316 = vshll.u32 %v195, 16
      %v318 = vrot.slane %v316, 5
      %v319 = vor.u32 %v315, %v318
      %v320 = vrot.slane %v319, 4
      %v322 = vshll.u32 %v196, 16
      %v324 = vrot.slane %v322, 5
      %v325 = vsel %vm215, %v320, %v324
      %v326 = vshrl.u32 %v196, 16
      %v328 = vrot.slane %v326, 4
      %v329 = vor.u32 %v328, %v324
      %v330 = vrot.slane %v329, 4
      %v332 = vshll.u32 %v197, 16
      %v334 = vrot.slane %v332, 5
      %v335 = vsel %vm215, %v330, %v334
      %v337 = vshrl.u32 %v198, 16
      %v339 = vrot.slane %v337, 4
      %v340 = vshll.u32 %v198, 16
      %v342 = vrot.slane %v340, 5
      %v343 = vor.u32 %v339, %v342
      %v344 = vrot.slane %v343, 4
      %v346 = vshll.u32 %v199, 16
      %v348 = vrot.slane %v346, 5
      %v349 = vsel %vm215, %v344, %v348
      %v350 = vshrl.u32 %v199, 16
      %v352 = vrot.slane %v350, 4
      %v353 = vor.u32 %v352, %v348
      %v354 = vrot.slane %v353, 4
      %v356 = vshll.u32 %v200, 16
      %v358 = vrot.slane %v356, 5
      %v359 = vsel %vm215, %v354, %v358
      %v361 = vshrl.u32 %v201, 16
      %v363 = vrot.slane %v361, 4
      %v364 = vshll.u32 %v201, 16
      %v366 = vrot.slane %v364, 5
      %v367 = vor.u32 %v363, %v366
      %v368 = vrot.slane %v367, 4
      %v370 = vshll.u32 %v202, 16
      %v372 = vrot.slane %v370, 5
      %v373 = vsel %vm215, %v368, %v372
      %v374 = vshrl.u32 %v202, 16
      %v376 = vrot.slane %v374, 4
      %v377 = vor.u32 %v376, %v372
      %v378 = vrot.slane %v377, 4
      %v380 = vshll.u32 %v203, 16
      %v382 = vrot.slane %v380, 5
      %v383 = vsel %vm215, %v378, %v382
      %v385 = vshrl.u32 %v204, 16
      %v387 = vrot.slane %v385, 4
      %v388 = vshll.u32 %v204, 16
      %v390 = vrot.slane %v388, 5
      %v391 = vor.u32 %v387, %v390
      %v392 = vrot.slane %v391, 4
      %v394 = vshll.u32 %v205, 16
      %v396 = vrot.slane %v394, 5
      %v397 = vsel %vm215, %v392, %v396
      %v398 = vshrl.u32 %v205, 16
      %v400 = vrot.slane %v398, 4
      %v401 = vor.u32 %v400, %v396
      %v402 = vrot.slane %v401, 4
      %v404 = vshll.u32 %v206, 16
      %v406 = vrot.slane %v404, 5
      %v407 = vsel %vm215, %v402, %v406
      %vm432 = vcmask 1042432
      %vm433 = vcmask 1046532
      %vm434 = vmor %vm432, %vm433
      %v435 = vrot.slane %v183, 5
      %v436 = vrot.slane %v435, 4
      %v437 = vrot.slane %v184, 5
      %v438 = vsel %vm434, %v436, %v437
      %v439 = vrot.slane %v437, 4
      %v440 = vrot.slane %v185, 5
      %v441 = vsel %vm434, %v439, %v440
      %v442 = vrot.slane %v186, 5
      %v443 = vrot.slane %v442, 4
      %v444 = vrot.slane %v187, 5
      %v445 = vsel %vm434, %v443, %v444
      %v446 = vrot.slane %v444, 4
      %v447 = vrot.slane %v188, 5
      %v448 = vsel %vm434, %v446, %v447
      %v449 = vrot.slane %v189, 5
      %v450 = vrot.slane %v449, 4
      %v451 = vrot.slane %v190, 5
      %v452 = vsel %vm434, %v450, %v451
      %v453 = vrot.slane %v451, 4
      %v454 = vrot.slane %v191, 5
      %v455 = vsel %vm434, %v453, %v454
      %v456 = vrot.slane %v192, 5
      %v457 = vrot.slane %v456, 4
      %v458 = vrot.slane %v193, 5
      %v459 = vsel %vm434, %v457, %v458
      %v460 = vrot.slane %v458, 4
      %v461 = vrot.slane %v194, 5
      %v462 = vsel %vm434, %v460, %v461
      %v463 = vrot.slane %v195, 5
      %v464 = vrot.slane %v463, 4
      %v465 = vrot.slane %v196, 5
      %v466 = vsel %vm434, %v464, %v465
      %v467 = vrot.slane %v465, 4
      %v468 = vrot.slane %v197, 5
      %v469 = vsel %vm434, %v467, %v468
      %v470 = vrot.slane %v198, 5
      %v471 = vrot.slane %v470, 4
      %v472 = vrot.slane %v199, 5
      %v473 = vsel %vm434, %v471, %v472
      %v474 = vrot.slane %v472, 4
      %v475 = vrot.slane %v200, 5
      %v476 = vsel %vm434, %v474, %v475
      %v477 = vrot.slane %v201, 5
      %v478 = vrot.slane %v477, 4
      %v479 = vrot.slane %v202, 5
      %v480 = vsel %vm434, %v478, %v479
      %v481 = vrot.slane %v479, 4
      %v482 = vrot.slane %v203, 5
      %v483 = vsel %vm434, %v481, %v482
      %v484 = vrot.slane %v204, 5
      %v485 = vrot.slane %v484, 4
      %v486 = vrot.slane %v205, 5
      %v487 = vsel %vm434, %v485, %v486
      %v488 = vrot.slane %v486, 4
      %v489 = vrot.slane %v206, 5
      %v490 = vsel %vm434, %v488, %v489
      %v492 = vshrl.u32 %v207, 16
      %v494 = vrot.slane %v492, 4
      %v495 = vshll.u32 %v207, 16
      %v497 = vrot.slane %v495, 5
      %v498 = vor.u32 %v494, %v497
      %v499 = vrot.slane %v498, 4
      %v501 = vshll.u32 %v208, 16
      %v503 = vrot.slane %v501, 5
      %v504 = vsel %vm215, %v499, %v503
      %v505 = vshrl.u32 %v208, 16
      %v507 = vrot.slane %v505, 4
      %v508 = vor.u32 %v507, %v503
      %v509 = vrot.slane %v508, 4
      %v511 = vshll.u32 %v209, 16
      %v513 = vrot.slane %v511, 5
      %v514 = vsel %vm215, %v509, %v513
      %v518 = vrot.slane %v207, 5
      %v519 = vrot.slane %v518, 4
      %v520 = vrot.slane %v208, 5
      %v521 = vsel %vm434, %v519, %v520
      %v522 = vrot.slane %v520, 4
      %v523 = vrot.slane %v209, 5
      %v524 = vsel %vm434, %v522, %v523
      %v526 = vshrl.u32 %v210, 16
      %v528 = vrot.slane %v526, 4
      %v529 = vshll.u32 %v210, 16
      %v531 = vrot.slane %v529, 5
      %v532 = vor.u32 %v528, %v531
      %v533 = vrot.slane %v532, 4
      %v535 = vshll.u32 %v211, 16
      %v537 = vrot.slane %v535, 5
      %v538 = vsel %vm215, %v533, %v537
      %v539 = vshrl.u32 %v211, 16
      %v541 = vrot.slane %v539, 4
      %v542 = vor.u32 %v541, %v537
      %v543 = vrot.slane %v542, 4
      %v545 = vshll.u32 %v212, 16
      %v547 = vrot.slane %v545, 5
      %v548 = vsel %vm215, %v543, %v547
      %v552 = vrot.slane %v210, 5
      %v553 = vrot.slane %v552, 4
      %v554 = vrot.slane %v211, 5
      %v555 = vsel %vm434, %v553, %v554
      %v556 = vrot.slane %v554, 4
      %v557 = vrot.slane %v212, 5
      %v558 = vsel %vm434, %v556, %v557
      %v559 = vunpack.c.l.b16 %v183
      %v560 = vunpack.c.l.b16 %v184
      %v561 = vunpack.c.l.b16 %v186
      %v562 = vunpack.c.l.b16 %v187
      %v563 = vunpack.c.l.b16 %v189
      %v564 = vunpack.c.l.b16 %v190
      %v565 = vunpack.c.l.b16 %v192
      %v566 = vunpack.c.l.b16 %v193
      %v567 = vunpack.c.l.b16 %v195
      %v568 = vunpack.c.l.b16 %v196
      %v569 = vunpack.c.l.b16 %v198
      %v570 = vunpack.c.l.b16 %v199
      %v571 = vunpack.c.l.b16 %v201
      %v572 = vunpack.c.l.b16 %v202
      %v573 = vunpack.c.l.b16 %v204
      %v574 = vunpack.c.l.b16 %v205
      %v575 = vpack.c.b16 %v560, %v559
      %v576 = vpack.c.b16 %v562, %v561
      %v577 = vpack.c.b16 %v564, %v563
      %v578 = vpack.c.b16 %v566, %v565
      %v579 = vpack.c.b16 %v568, %v567
      %v580 = vpack.c.b16 %v570, %v569
      %v581 = vpack.c.b16 %v572, %v571
      %v582 = vpack.c.b16 %v574, %v573
      %v583 = vunpack.c.l.b16 %v229
      %v584 = vunpack.c.l.b16 %v239
      %v585 = vunpack.c.l.b16 %v253
      %v586 = vunpack.c.l.b16 %v263
      %v587 = vunpack.c.l.b16 %v277
      %v588 = vunpack.c.l.b16 %v287
      %v589 = vunpack.c.l.b16 %v301
      %v590 = vunpack.c.l.b16 %v311
      %v591 = vunpack.c.l.b16 %v325
      %v592 = vunpack.c.l.b16 %v335
      %v593 = vunpack.c.l.b16 %v349
      %v594 = vunpack.c.l.b16 %v359
      %v595 = vunpack.c.l.b16 %v373
      %v596 = vunpack.c.l.b16 %v383
      %v597 = vunpack.c.l.b16 %v397
      %v598 = vunpack.c.l.b16 %v407
      %v599 = vpack.c.b16 %v584, %v583
      %v600 = vpack.c.b16 %v586, %v585
      %v601 = vpack.c.b16 %v588, %v587
      %v602 = vpack.c.b16 %v590, %v589
      %v603 = vpack.c.b16 %v592, %v591
      %v604 = vpack.c.b16 %v594, %v593
      %v605 = vpack.c.b16 %v596, %v595
      %v606 = vpack.c.b16 %v598, %v597
      %607 = vrot.lane.b32.xlu0 %v599, 4
      %v608 = vpop.permute.xlu0 %607
      %609 = vrot.lane.b32.xlu0 %v600, 4
      %v610 = vpop.permute.xlu0 %609
      %611 = vrot.lane.b32.xlu0 %v601, 4
      %v612 = vpop.permute.xlu0 %611
      %613 = vrot.lane.b32.xlu0 %v602, 4
      %v614 = vpop.permute.xlu0 %613
      %615 = vrot.lane.b32.xlu0 %v603, 4
      %v616 = vpop.permute.xlu0 %615
      %617 = vrot.lane.b32.xlu0 %v604, 4
      %v618 = vpop.permute.xlu0 %617
      %619 = vrot.lane.b32.xlu0 %v605, 4
      %v620 = vpop.permute.xlu0 %619
      %621 = vrot.lane.b32.xlu0 %v606, 4
      %v622 = vpop.permute.xlu0 %621
      %v623 = vunpack.c.l.b16 %v438
      %v624 = vunpack.c.l.b16 %v441
      %v625 = vunpack.c.l.b16 %v445
      %v626 = vunpack.c.l.b16 %v448
      %v627 = vunpack.c.l.b16 %v452
      %v628 = vunpack.c.l.b16 %v455
      %v629 = vunpack.c.l.b16 %v459
      %v630 = vunpack.c.l.b16 %v462
      %v631 = vunpack.c.l.b16 %v466
      %v632 = vunpack.c.l.b16 %v469
      %v633 = vunpack.c.l.b16 %v473
      %v634 = vunpack.c.l.b16 %v476
      %v635 = vunpack.c.l.b16 %v480
      %v636 = vunpack.c.l.b16 %v483
      %v637 = vunpack.c.l.b16 %v487
      %v638 = vunpack.c.l.b16 %v490
      %v639 = vpack.c.b16 %v624, %v623
      %v640 = vpack.c.b16 %v626, %v625
      %v641 = vpack.c.b16 %v628, %v627
      %v642 = vpack.c.b16 %v630, %v629
      %v643 = vpack.c.b16 %v632, %v631
      %v644 = vpack.c.b16 %v634, %v633
      %v645 = vpack.c.b16 %v636, %v635
      %v646 = vpack.c.b16 %v638, %v637
      %647 = vrot.lane.b32.xlu0 %v639, 8
      %v648 = vpop.permute.xlu0 %647
      %649 = vrot.lane.b32.xlu0 %v640, 8
      %v650 = vpop.permute.xlu0 %649
      %651 = vrot.lane.b32.xlu0 %v641, 8
      %v652 = vpop.permute.xlu0 %651
      %653 = vrot.lane.b32.xlu0 %v642, 8
      %v654 = vpop.permute.xlu0 %653
      %655 = vrot.lane.b32.xlu0 %v643, 8
      %v656 = vpop.permute.xlu0 %655
      %657 = vrot.lane.b32.xlu0 %v644, 8
      %v658 = vpop.permute.xlu0 %657
      %659 = vrot.lane.b32.xlu0 %v645, 8
      %v660 = vpop.permute.xlu0 %659
      %661 = vrot.lane.b32.xlu0 %v646, 8
      %v662 = vpop.permute.xlu0 %661
      %v663 = vunpack.c.l.b16 %v207
      %v664 = vunpack.c.l.b16 %v208
      %v665 = vpack.c.b16 %v664, %v663
      %666 = vrot.lane.b32.xlu0 %v576, 12
      %v667 = vpop.permute.xlu0 %666
      %668 = vrot.lane.b32.xlu0 %v577, 12
      %v669 = vpop.permute.xlu0 %668
      %670 = vrot.lane.b32.xlu0 %v578, 12
      %v671 = vpop.permute.xlu0 %670
      %672 = vrot.lane.b32.xlu0 %v579, 12
      %v673 = vpop.permute.xlu0 %672
      %674 = vrot.lane.b32.xlu0 %v580, 12
      %v675 = vpop.permute.xlu0 %674
      %676 = vrot.lane.b32.xlu0 %v581, 12
      %v677 = vpop.permute.xlu0 %676
      %678 = vrot.lane.b32.xlu0 %v582, 12
      %v679 = vpop.permute.xlu0 %678
      %680 = vrot.lane.b32.xlu0 %v665, 12
      %v681 = vpop.permute.xlu0 %680
      %v682 = vunpack.c.l.b16 %v504
      %v683 = vunpack.c.l.b16 %v514
      %v684 = vpack.c.b16 %v683, %v682
      %685 = vrot.lane.b32.xlu0 %v600, 16
      %v686 = vpop.permute.xlu0 %685
      %687 = vrot.lane.b32.xlu0 %v601, 16
      %v688 = vpop.permute.xlu0 %687
      %689 = vrot.lane.b32.xlu0 %v602, 16
      %v690 = vpop.permute.xlu0 %689
      %691 = vrot.lane.b32.xlu0 %v603, 16
      %v692 = vpop.permute.xlu0 %691
      %693 = vrot.lane.b32.xlu0 %v604, 16
      %v694 = vpop.permute.xlu0 %693
      %695 = vrot.lane.b32.xlu0 %v605, 16
      %v696 = vpop.permute.xlu0 %695
      %697 = vrot.lane.b32.xlu0 %v606, 16
      %v698 = vpop.permute.xlu0 %697
      %699 = vrot.lane.b32.xlu0 %v684, 16
      %v700 = vpop.permute.xlu0 %699
      %v701 = vunpack.c.l.b16 %v521
      %v702 = vunpack.c.l.b16 %v524
      %v703 = vpack.c.b16 %v702, %v701
      %704 = vrot.lane.b32.xlu0 %v640, 20
      %v705 = vpop.permute.xlu0 %704
      %706 = vrot.lane.b32.xlu0 %v641, 20
      %v707 = vpop.permute.xlu0 %706
      %708 = vrot.lane.b32.xlu0 %v642, 20
      %v709 = vpop.permute.xlu0 %708
      %710 = vrot.lane.b32.xlu0 %v643, 20
      %v711 = vpop.permute.xlu0 %710
      %712 = vrot.lane.b32.xlu0 %v644, 20
      %v713 = vpop.permute.xlu0 %712
      %714 = vrot.lane.b32.xlu0 %v645, 20
      %v715 = vpop.permute.xlu0 %714
      %716 = vrot.lane.b32.xlu0 %v646, 20
      %v717 = vpop.permute.xlu0 %716
      %718 = vrot.lane.b32.xlu0 %v703, 20
      %v719 = vpop.permute.xlu0 %718
      %v720 = vunpack.c.l.b16 %v210
      %v721 = vunpack.c.l.b16 %v211
      %v722 = vpack.c.b16 %v721, %v720
      %723 = vrot.lane.b32.xlu0 %v577, 24
      %v724 = vpop.permute.xlu0 %723
      %725 = vrot.lane.b32.xlu0 %v578, 24
      %v726 = vpop.permute.xlu0 %725
      %727 = vrot.lane.b32.xlu0 %v579, 24
      %v728 = vpop.permute.xlu0 %727
      %729 = vrot.lane.b32.xlu0 %v580, 24
      %v730 = vpop.permute.xlu0 %729
      %731 = vrot.lane.b32.xlu0 %v581, 24
      %v732 = vpop.permute.xlu0 %731
      %733 = vrot.lane.b32.xlu0 %v582, 24
      %v734 = vpop.permute.xlu0 %733
      %735 = vrot.lane.b32.xlu0 %v665, 24
      %v736 = vpop.permute.xlu0 %735
      %737 = vrot.lane.b32.xlu0 %v722, 24
      %v738 = vpop.permute.xlu0 %737
      %v739 = vunpack.c.l.b16 %v538
      %v740 = vunpack.c.l.b16 %v548
      %v741 = vpack.c.b16 %v740, %v739
      %742 = vrot.lane.b32.xlu0 %v601, 28
      %v743 = vpop.permute.xlu0 %742
      %744 = vrot.lane.b32.xlu0 %v602, 28
      %v745 = vpop.permute.xlu0 %744
      %746 = vrot.lane.b32.xlu0 %v603, 28
      %v747 = vpop.permute.xlu0 %746
      %748 = vrot.lane.b32.xlu0 %v604, 28
      %v749 = vpop.permute.xlu0 %748
      %750 = vrot.lane.b32.xlu0 %v605, 28
      %v751 = vpop.permute.xlu0 %750
      %752 = vrot.lane.b32.xlu0 %v606, 28
      %v753 = vpop.permute.xlu0 %752
      %754 = vrot.lane.b32.xlu0 %v684, 28
      %v755 = vpop.permute.xlu0 %754
      %756 = vrot.lane.b32.xlu0 %v741, 28
      %v757 = vpop.permute.xlu0 %756
      %v758 = vunpack.c.l.b16 %v555
      %v759 = vunpack.c.l.b16 %v558
      %v760 = vpack.c.b16 %v759, %v758
      %761 = vrot.lane.b32.xlu0 %v641, 32
      %v762 = vpop.permute.xlu0 %761
      %763 = vrot.lane.b32.xlu0 %v642, 32
      %v764 = vpop.permute.xlu0 %763
      %765 = vrot.lane.b32.xlu0 %v643, 32
      %v766 = vpop.permute.xlu0 %765
      %767 = vrot.lane.b32.xlu0 %v644, 32
      %v768 = vpop.permute.xlu0 %767
      %769 = vrot.lane.b32.xlu0 %v645, 32
      %v770 = vpop.permute.xlu0 %769
      %771 = vrot.lane.b32.xlu0 %v646, 32
      %v772 = vpop.permute.xlu0 %771
      %773 = vrot.lane.b32.xlu0 %v703, 32
      %v774 = vpop.permute.xlu0 %773
      %775 = vrot.lane.b32.xlu0 %v760, 32
      %v776 = vpop.permute.xlu0 %775
      %vm777 = vcmask 31744
      %v780 = vsel %vm777, %v575, %v608
      %v783 = vsel %vm777, %v576, %v610
      %v786 = vsel %vm777, %v577, %v612
      %v789 = vsel %vm777, %v578, %v614
      %v792 = vsel %vm777, %v579, %v616
      %v795 = vsel %vm777, %v580, %v618
      %v798 = vsel %vm777, %v581, %v620
      %v801 = vsel %vm777, %v582, %v622
      %vm802 = vcmask 64512
      %v804 = vsel %vm802, %v780, %v648
      %v806 = vsel %vm802, %v783, %v650
      %v808 = vsel %vm802, %v786, %v652
      %v810 = vsel %vm802, %v789, %v654
      %v812 = vsel %vm802, %v792, %v656
      %v814 = vsel %vm802, %v795, %v658
      %v816 = vsel %vm802, %v798, %v660
      %v818 = vsel %vm802, %v801, %v662
      %vm819 = vcmask 97280
      %v821 = vsel %vm819, %v804, %v667
      %v823 = vsel %vm819, %v806, %v669
      %v825 = vsel %vm819, %v808, %v671
      %v827 = vsel %vm819, %v810, %v673
      %v829 = vsel %vm819, %v812, %v675
      %v831 = vsel %vm819, %v814, %v677
      %v833 = vsel %vm819, %v816, %v679
      %v835 = vsel %vm819, %v818, %v681
      %vm836 = vcmask 130048
      %v838 = vsel %vm836, %v821, %v686
      %v840 = vsel %vm836, %v823, %v688
      %v842 = vsel %vm836, %v825, %v690
      %v844 = vsel %vm836, %v827, %v692
      %v846 = vsel %vm836, %v829, %v694
      %v848 = vsel %vm836, %v831, %v696
      %v850 = vsel %vm836, %v833, %v698
      %v852 = vsel %vm836, %v835, %v700
      %vm853 = vcmask 162816
      %v855 = vsel %vm853, %v838, %v705
      %v857 = vsel %vm853, %v840, %v707
      %v859 = vsel %vm853, %v842, %v709
      %v861 = vsel %vm853, %v844, %v711
      %v863 = vsel %vm853, %v846, %v713
      %v865 = vsel %vm853, %v848, %v715
      %v867 = vsel %vm853, %v850, %v717
      %v869 = vsel %vm853, %v852, %v719
      %vm870 = vcmask 195584
      %v872 = vsel %vm870, %v855, %v724
      %v874 = vsel %vm870, %v857, %v726
      %v876 = vsel %vm870, %v859, %v728
      %v878 = vsel %vm870, %v861, %v730
      %v880 = vsel %vm870, %v863, %v732
      %v882 = vsel %vm870, %v865, %v734
      %v884 = vsel %vm870, %v867, %v736
      %v886 = vsel %vm870, %v869, %v738
      %vm887 = vcmask 228352
      %v889 = vsel %vm887, %v872, %v743
      %v891 = vsel %vm887, %v874, %v745
      %v893 = vsel %vm887, %v876, %v747
      %v895 = vsel %vm887, %v878, %v749
      %v897 = vsel %vm887, %v880, %v751
      %v899 = vsel %vm887, %v882, %v753
      %v901 = vsel %vm887, %v884, %v755
      %v903 = vsel %vm887, %v886, %v757
      %vm904 = vcmask 261120
      %v906 = vsel %vm904, %v889, %v762
      %v908 = vsel %vm904, %v891, %v764
      %v910 = vsel %vm904, %v893, %v766
      %v912 = vsel %vm904, %v895, %v768
      %v914 = vsel %vm904, %v897, %v770
      %v916 = vsel %vm904, %v899, %v772
      %v918 = vsel %vm904, %v901, %v774
      %v920 = vsel %vm904, %v903, %v776
      %v921 = vld [vmem:[%s1] sm:$0xf]
      %v922 = vld [vmem:[%s1 + $0x4] sm:$0xf]
      %v923 = vld [vmem:[%s1 + $0x8] sm:$0xf]
      %v924 = vld [vmem:[%s1 + $0xc] sm:$0xf]
      %v925 = vld [vmem:[%s1 + $0x10] sm:$0x3]
      %v931 = vunpack.c.l.b16 %v921
      %v932 = vunpack.c.l.b16 %v922
      %v933 = vunpack.c.l.b16 %v923
      %v934 = vunpack.c.l.b16 %v924
      %v935 = vunpack.c.l.b16 %v925
      %v936 = vpack.c.b16 %v932, %v931
      %v937 = vpack.c.b16 %v934, %v933
      %v938 = vpack.c.b16 %v935, %v935
      %vm941 = vcmask 293888
      %v942 = vsel %vm941, %v906, 0
      %v944 = vsel %vm941, %v908, 0
      %v946 = vsel %vm941, %v910, 0
      %v948 = vsel %vm941, %v912, 0
      %v950 = vsel %vm941, %v914, 0
      %v952 = vsel %vm941, %v916, 0
      %v954 = vsel %vm941, %v918, 0
      %v956 = vsel %vm941, %v920, 0
      %vm958 = vcmask 1041408
      %v960 = vsel %vm958, %v938, 0
      %962 = vmatpush.bf16.msra.mxu0 0
      %963 = vmatpush.bf16.msra.mxu0 0
      %964 = vmatpush.bf16.msra.mxu0 0
      %965 = vmatpush.bf16.msra.mxu0 0
      %966 = vmatpush.bf16.msra.mxu0 0
      %967 = vmatpush.bf16.msra.mxu0 %v960
      %968 = vmatpush.bf16.msra.mxu0 %v937
      %969 = vmatpush.bf16.msra.mxu0 %v936
      %970 = vmatmul.bf16.gmra.mxu0 %v942
      %v971 = vpop.f32.mrf.mxu0
      %v972 = vadd.f32 0.0, %v971
      %v973 = vpop.f32.mrf.mxu0
      %v974 = vadd.f32 0.0, %v973
      %975 = vmatmul.bf16.gmra.mxu0 %v944
      %v976 = vpop.f32.mrf.mxu0
      %v977 = vadd.f32 0.0, %v976
      %v978 = vpop.f32.mrf.mxu0
      %v979 = vadd.f32 0.0, %v978
      %980 = vmatmul.bf16.gmra.mxu0 %v946
      %v981 = vpop.f32.mrf.mxu0
      %v982 = vadd.f32 0.0, %v981
      %v983 = vpop.f32.mrf.mxu0
      %v984 = vadd.f32 0.0, %v983
      %985 = vmatmul.bf16.gmra.mxu0 %v948
      %v986 = vpop.f32.mrf.mxu0
      %v987 = vadd.f32 0.0, %v986
      %v988 = vpop.f32.mrf.mxu0
      %v989 = vadd.f32 0.0, %v988
      %990 = vmatmul.bf16.gmra.mxu0 %v950
      %v991 = vpop.f32.mrf.mxu0
      %v992 = vadd.f32 0.0, %v991
      %v993 = vpop.f32.mrf.mxu0
      %v994 = vadd.f32 0.0, %v993
      %995 = vmatmul.bf16.gmra.mxu0 %v952
      %v996 = vpop.f32.mrf.mxu0
      %v997 = vadd.f32 0.0, %v996
      %v998 = vpop.f32.mrf.mxu0
      %v999 = vadd.f32 0.0, %v998
      %1000 = vmatmul.bf16.gmra.mxu0 %v954
      %v1001 = vpop.f32.mrf.mxu0
      %v1002 = vadd.f32 0.0, %v1001
      %v1003 = vpop.f32.mrf.mxu0
      %v1004 = vadd.f32 0.0, %v1003
      %1005 = vmatmul.bf16.gmra.mxu0 %v956
      %v1006 = vpop.f32.mrf.mxu0
      %v1007 = vadd.f32 0.0, %v1006
      %v1008 = vpop.f32.mrf.mxu0
      %v1009 = vadd.f32 0.0, %v1008
      %1010 = vdwg.mxu0
      %1011 = vst.msk [vmem:[%s177] sm:$0xff] %vm802, %v972
      %1012 = vst.msk [vmem:[%s177 + $0x8] sm:$0xff] %vm802, %v974
      %1013 = vst.msk [vmem:[%s177 + $0x10] sm:$0xff] %vm802, %v977
      %1014 = vst.msk [vmem:[%s177 + $0x18] sm:$0xff] %vm802, %v979
      %1015 = vst.msk [vmem:[%s177 + $0x20] sm:$0xff] %vm802, %v982
      %1016 = vst.msk [vmem:[%s177 + $0x28] sm:$0xff] %vm802, %v984
      %1017 = vst.msk [vmem:[%s177 + $0x30] sm:$0xff] %vm802, %v987
      %1018 = vst.msk [vmem:[%s177 + $0x38] sm:$0xff] %vm802, %v989
      %1019 = vst.msk [vmem:[%s177 + $0x40] sm:$0xff] %vm802, %v992
      %1020 = vst.msk [vmem:[%s177 + $0x48] sm:$0xff] %vm802, %v994
      %1021 = vst.msk [vmem:[%s177 + $0x50] sm:$0xff] %vm802, %v997
      %1022 = vst.msk [vmem:[%s177 + $0x58] sm:$0xff] %vm802, %v999
      %1023 = vst.msk [vmem:[%s177 + $0x60] sm:$0xff] %vm802, %v1002
      %1024 = vst.msk [vmem:[%s177 + $0x68] sm:$0xff] %vm802, %v1004
      %1025 = vst.msk [vmem:[%s177 + $0x70] sm:$0xff] %vm802, %v1007
      %1026 = vst.msk [vmem:[%s177 + $0x78] sm:$0xff] %vm802, %v1009
      %v1027 = vsel %vm802, %v972, 0.0
      %v1028 = vsel %vm802, %v974, 0.0
      %v1029 = vadd.f32 %v1027, %v1028
      %v1030 = vsel %vm802, %v977, 0.0
      %v1031 = vadd.f32 %v1029, %v1030
      %v1032 = vsel %vm802, %v979, 0.0
      %v1033 = vadd.f32 %v1031, %v1032
      %v1034 = vsel %vm802, %v982, 0.0
      %v1035 = vadd.f32 %v1033, %v1034
      %v1036 = vsel %vm802, %v984, 0.0
      %v1037 = vadd.f32 %v1035, %v1036
      %v1038 = vsel %vm802, %v987, 0.0
      %v1039 = vadd.f32 %v1037, %v1038
      %v1040 = vsel %vm802, %v989, 0.0
      %v1041 = vadd.f32 %v1039, %v1040
      %v1042 = vsel %vm802, %v992, 0.0
      %v1043 = vadd.f32 %v1041, %v1042
      %v1044 = vsel %vm802, %v994, 0.0
      %v1045 = vadd.f32 %v1043, %v1044
      %v1046 = vsel %vm802, %v997, 0.0
      %v1047 = vadd.f32 %v1045, %v1046
      %v1048 = vsel %vm802, %v999, 0.0
      %v1049 = vadd.f32 %v1047, %v1048
      %v1050 = vsel %vm802, %v1002, 0.0
      %v1051 = vadd.f32 %v1049, %v1050
      %v1052 = vsel %vm802, %v1004, 0.0
      %v1053 = vadd.f32 %v1051, %v1052
      %v1054 = vsel %vm802, %v1007, 0.0
      %v1055 = vadd.f32 %v1053, %v1054
      %v1056 = vsel %vm802, %v1009, 0.0
      %v1057 = vadd.f32 %v1055, %v1056
      %v1058 = vrot.slane %v1057, 4
      %v1059 = vadd.f32 %v1057, %v1058
      %v1060 = vrot.slane %v1059, 2
      %v1061 = vadd.f32 %v1059, %v1060
      %v1062 = vrot.slane %v1061, 1
      %v1063 = vadd.f32 %v1061, %v1062
      %v1064 = vmul.f32 %v972, %v972
      %v1065 = vmul.f32 %v974, %v974
      %v1066 = vmul.f32 %v977, %v977
      %v1067 = vmul.f32 %v979, %v979
      %v1068 = vmul.f32 %v982, %v982
      %v1069 = vmul.f32 %v984, %v984
      %v1070 = vmul.f32 %v987, %v987
      %v1071 = vmul.f32 %v989, %v989
      %v1072 = vmul.f32 %v992, %v992
      %v1073 = vmul.f32 %v994, %v994
      %v1074 = vmul.f32 %v997, %v997
      %v1075 = vmul.f32 %v999, %v999
      %v1076 = vmul.f32 %v1002, %v1002
      %v1077 = vmul.f32 %v1004, %v1004
      %v1078 = vmul.f32 %v1007, %v1007
      %v1079 = vmul.f32 %v1009, %v1009
      %v1080 = vsel %vm802, %v1064, 0.0
      %v1081 = vsel %vm802, %v1065, 0.0
      %v1082 = vadd.f32 %v1080, %v1081
      %v1083 = vsel %vm802, %v1066, 0.0
      %v1084 = vadd.f32 %v1082, %v1083
      %v1085 = vsel %vm802, %v1067, 0.0
      %v1086 = vadd.f32 %v1084, %v1085
      %v1087 = vsel %vm802, %v1068, 0.0
      %v1088 = vadd.f32 %v1086, %v1087
      %v1089 = vsel %vm802, %v1069, 0.0
      %v1090 = vadd.f32 %v1088, %v1089
      %v1091 = vsel %vm802, %v1070, 0.0
      %v1092 = vadd.f32 %v1090, %v1091
      %v1093 = vsel %vm802, %v1071, 0.0
      %v1094 = vadd.f32 %v1092, %v1093
      %v1095 = vsel %vm802, %v1072, 0.0
      %v1096 = vadd.f32 %v1094, %v1095
      %v1097 = vsel %vm802, %v1073, 0.0
      %v1098 = vadd.f32 %v1096, %v1097
      %v1099 = vsel %vm802, %v1074, 0.0
      %v1100 = vadd.f32 %v1098, %v1099
      %v1101 = vsel %vm802, %v1075, 0.0
      %v1102 = vadd.f32 %v1100, %v1101
      %v1103 = vsel %vm802, %v1076, 0.0
      %v1104 = vadd.f32 %v1102, %v1103
      %v1105 = vsel %vm802, %v1077, 0.0
      %v1106 = vadd.f32 %v1104, %v1105
      %v1107 = vsel %vm802, %v1078, 0.0
      %v1108 = vadd.f32 %v1106, %v1107
      %v1109 = vsel %vm802, %v1079, 0.0
      %v1110 = vadd.f32 %v1108, %v1109
      %v1111 = vrot.slane %v1110, 4
      %v1112 = vadd.f32 %v1110, %v1111
      %v1113 = vrot.slane %v1112, 2
      %v1114 = vadd.f32 %v1112, %v1113
      %v1115 = vrot.slane %v1114, 1
      %v1116 = vadd.f32 %v1114, %v1115
      %vm1117 = vcmask 1040384
      %v1118 = vsel %vm1117, %v1063, %v1116
      %vm1119 = vcmask 58368
      %1120 = vst.msk [vmem:[%s181] sm:$0x3] %vm1119, %v1118
      %p1121 = scmp.lt.s32.totalorder %s15, 3
      %s1122 = scalar_select %p1121, %s15, 3
      %s1123 = smul.addr %s1122, 16
      %s1124 = smul.addr %s1123, 8
      %s1125 = scalar_lea.vmem %s2, %s1124
      %p1126 = scmp.lt.s32.totalorder %s15, 3
      %s1127 = scalar_select %p1126, %s15, 3
      %s1128 = smul.addr %s1127, 2
      %s1129 = scalar_lea.vmem %s3, %s1128
      // Predicated region
      $region29: #{double_conv.4} parent=27 // pred_check
        %p1130 = pneg %p80
      $region30: #{double_conv.4} parent=27 // pred_check_branch
        %1132 = sbr.rel (%p1130) target = $region32
      $region31: #{double_conv.4} parent=27 // pred_region
        _
      $region32: #{double_conv.4} parent=27 // pred_fallthru
        _
      // Predicated region
      $region33: #{double_conv.4} parent=27 // pred_check
        %p1133 = pneg %p106
      $region34: #{double_conv.4} parent=27 // pred_check_branch
        %1135 = sbr.rel (%p1133) target = $region36
      $region35: #{double_conv.4} parent=27 // pred_region
        _
      $region36: #{double_conv.4} parent=27 // pred_fallthru
        _
    $region28: #{double_conv.4} parent=5 // pred_fallthru
      _
    %p1136 = scmp.le.s32.totalorder 2, %s10
    // Predicated region
    $region37: #{double_conv.4} parent=5 // pred_check
      %p1137 = pneg %p1136
    $region38: #{double_conv.4} parent=5 // pred_check_branch
      %1139 = sbr.rel (%p1137) target = $region40
    $region39: #{double_conv.4} parent=5 // pred_region
      %s1140 = ssub.s32 %s10, 2
      // Predicated region
      $region41: #{double_conv.4} parent=39 // pred_check
        %p1141 = pneg %p86
      $region42: #{double_conv.4} parent=39 // pred_check_branch
        %1143 = sbr.rel (%p1141) target = $region44
      $region43: #{double_conv.4} parent=39 // pred_region
        %p1144 = scmp.lt.s32.totalorder %s16, 3
        %s1145 = scalar_select %p1144, %s16, 3
        %s1146 = smul.addr %s1145, 16
        %s1147 = smul.addr %s1146, 8
        %s1148 = scalar_lea.vmem %s2, %s1147
      $region44: #{double_conv.4} parent=39 // pred_fallthru
        _
      // Predicated region
      $region45: #{double_conv.4} parent=39 // pred_check
        %p1149 = pneg %p112
      $region46: #{double_conv.4} parent=39 // pred_check_branch
        %1151 = sbr.rel (%p1149) target = $region48
      $region47: #{double_conv.4} parent=39 // pred_region
        %p1152 = scmp.lt.s32.totalorder %s16, 3
        %s1153 = scalar_select %p1152, %s16, 3
        %s1154 = smul.addr %s1153, 2
        %s1155 = scalar_lea.vmem %s3, %s1154
      $region48: #{double_conv.4} parent=39 // pred_fallthru
        _
    $region40: #{double_conv.4} parent=5 // pred_fallthru
      _
  $region6: #{double_conv.4} parent=0 // loop_footer
    %s14 = sadd.s32 1, %s10
  $region7: #{double_conv.4} parent=0 // loop_footer_branch
    %9 = sbr.rel target = $region3
  $region8: #{double_conv.4} parent=0 // loop_exit
    _

// kernel: double_conv.7
$region0: #{double_conv.7}
  #allocation0 [shape = 'u32[]', space=smem, size = 0x4, offset = 0x4, fixed_abs, tag = 'smem constant byte address 0x4 - core index']
  #allocation1 [shape = 'u32[72,128]{1,0:T(1,128)}', space=vmem, size = 0x9000, scoped, tag = 'internal scratch']
  %s0 = inlined_call_operand.vmem [shape: f32[32,128], index: 0, kind: input, shape index: {}]
  %s1 = inlined_call_operand.vmem [shape: f32[1,128], index: 1, kind: input, shape index: {}]
  %s2 = inlined_call_operand.vmem [shape: f32[1,128], index: 2, kind: input, shape index: {}]
  %s3 = inlined_call_operand.vmem [shape: f32[32,128], index: 3, kind: output, shape index: {}]
  %s4 = sld [smem:[#allocation0]]
  $region22: #{double_conv.7} parent=0
    _
  %s6 = ssub.s32 1, %s4
  %s7 = scalar_select 0, %s6, %s4
  // Predicated region
  $region2: #{double_conv.7} parent=0 // pred_check
    _
  $region3: #{double_conv.7} parent=0 // pred_check_branch
    %9 = sbr.rel (0) target = $region5
  $region4: #{double_conv.7} parent=0 // pred_region
    _
  $region5: #{double_conv.7} parent=0 // pred_fallthru
    _
  // Predicated region
  $region6: #{double_conv.7} parent=0 // pred_check
    _
  $region7: #{double_conv.7} parent=0 // pred_check_branch
    %11 = sbr.rel (0) target = $region9
  $region8: #{double_conv.7} parent=0 // pred_region
    _
  $region9: #{double_conv.7} parent=0 // pred_fallthru
    _
  // Predicated region
  $region10: #{double_conv.7} parent=0 // pred_check
    _
  $region11: #{double_conv.7} parent=0 // pred_check_branch
    %13 = sbr.rel (0) target = $region13
  $region12: #{double_conv.7} parent=0 // pred_region
    _
  $region13: #{double_conv.7} parent=0 // pred_fallthru
    _
  %v14 = vld [vmem:[%s0] sm:$0xff]
  %v15 = vld [vmem:[%s0 + $0x8] sm:$0xff]
  %v16 = vld [vmem:[%s0 + $0x10] sm:$0xff]
  %v17 = vld [vmem:[%s0 + $0x18] sm:$0xff]
  %v18 = vld [vmem:[%s1] sm:$0x1]
  %v20 = vperm.slane %v18, 0
  %v22 = vmul.f32 %v14, %v20
  %v23 = vmul.f32 %v15, %v20
  %v24 = vmul.f32 %v16, %v20
  %v25 = vmul.f32 %v17, %v20
  %v26 = vld [vmem:[%s2] sm:$0x1]
  %v28 = vperm.slane %v26, 0
  %v30 = vadd.f32 %v22, %v28
  %v31 = vadd.f32 %v23, %v28
  %v32 = vadd.f32 %v24, %v28
  %v33 = vadd.f32 %v25, %v28
  %v34 = vmax.f32 %v30, 0.0
  %v35 = vmax.f32 %v31, 0.0
  %v36 = vmax.f32 %v32, 0.0
  %v37 = vmax.f32 %v33, 0.0
  %38 = vst [vmem:[%s3] sm:$0xff] %v34
  %39 = vst [vmem:[%s3 + $0x8] sm:$0xff] %v35
  %40 = vst [vmem:[%s3 + $0x10] sm:$0xff] %v36
  %41 = vst [vmem:[%s3 + $0x18] sm:$0xff] %v37
  // Predicated region
  $region14: #{double_conv.7} parent=0 // pred_check
    _
  $region15: #{double_conv.7} parent=0 // pred_check_branch
    %43 = sbr.rel (0) target = $region17
  $region16: #{double_conv.7} parent=0 // pred_region
    _
  $region17: #{double_conv.7} parent=0 // pred_fallthru
    _
  // Predicated region
  $region18: #{double_conv.7} parent=0 // pred_check
    _
  $region19: #{double_conv.7} parent=0 // pred_check_branch
    %45 = sbr.rel (0) target = $region21
  $region20: #{double_conv.7} parent=0 // pred_region
    _
  $region21: #{double_conv.7} parent=0 // pred_fallthru
    _

// kernel: double_conv.6
$region0: #{double_conv.6}
  #allocation0 [shape = 'u32[]', space=smem, size = 0x4, offset = 0x4, fixed_abs, tag = 'smem constant byte address 0x4 - core index']
  #allocation1 [shape = 'u32[72,128]{1,0:T(1,128)}', space=vmem, size = 0x9000, scoped, tag = 'internal scratch']
  %s0 = inlined_call_operand.vmem [shape: bf16[4,10,18,8], index: 0, kind: input, shape index: {}]
  %s1 = inlined_call_operand.vmem [shape: bf16[72,8], index: 1, kind: input, shape index: {}]
  %s2 = inlined_call_operand.vmem [shape: f32[4,128,8], index: 2, kind: output, shape index: {0}]
  %s3 = inlined_call_operand.vmem [shape: f32[4,2,8], index: 3, kind: output, shape index: {1}]
  %4 = xla_tuple %s2, %s3
  %s5 = sld [smem:[#allocation0]]
  $region49: #{double_conv.6} parent=0
    _
  %s7 = ssub.s32 1, %s5
  %s8 = scalar_select 0, %s7, %s5
  loop: start=0, step=1, limit=6
  $region2: #{double_conv.6} parent=0 // loop_pre_header
    _
  $region3: #{double_conv.6} parent=0 // loop_header
    %s10 = sphi 0, %s14
    %p11 = scmp.ge.s32.totalorder %s10, 6
    %s20 = sphi 0, %s22
    %s23 = sphi 0, %s20
    %s24 = sphi 0, %s23
    %s40 = sphi 0, %s24
    %s44 = sphi 0, %s44
    %s46 = sphi 0, %s44
    %s47 = sphi 0, %s46
    %s61 = sphi 0, %s47
    %s67 = sphi 0, %s69
    %s70 = sphi 0, %s67
    %s71 = sphi 0, %s70
    %s87 = sphi 0, %s71
    %s93 = sphi 0, %s95
    %s96 = sphi 0, %s93
    %s97 = sphi 0, %s96
    %s113 = sphi 0, %s97
  $region4: #{double_conv.6} parent=0 // loop_header_branch
    %13 = sbr.rel (%p11) target = $region8
  $region5: #{double_conv.6} parent=0 // loop_body
    %s15 = ssub.s32 %s10, 1
    %s16 = ssub.s32 %s10, 2
    %s17 = sadd.s32 %s10, 1
    %s18 = ssub.s32 %s10, %s17
    %p19 = scmp.eq.s32.totalorder %s18, 0
    %s21 = sadd.s32 %s20, 1
    %s22 = scalar_select %p19, %s20, %s21
    %p25 = pneg %p19
    %p26 = scmp.eq.s32.totalorder %s10, 3
    %p27 = por %p25, %p26
    %p28 = scmp.ne.s32.totalorder %s20, %s23
    %p29 = scmp.eq.s32.totalorder %s10, 0
    %p30 = por %p28, %p29
    %p31 = scmp.ne.s32.totalorder %s20, %s23
    %p32 = scmp.eq.s32.totalorder %s15, 3
    %p33 = por %p31, %p32
    %p34 = scmp.ne.s32.totalorder %s23, %s24
    %p35 = scmp.eq.s32.totalorder %s15, 0
    %p36 = por %p34, %p35
    %p37 = scmp.ne.s32.totalorder %s23, %s24
    %p38 = scmp.eq.s32.totalorder %s16, 3
    %p39 = por %p37, %p38
    %p41 = scmp.ne.s32.totalorder %s24, %s40
    %p42 = scmp.eq.s32.totalorder %s16, 0
    %p43 = por %p41, %p42
    %s45 = sadd.s32 %s44, 1
    %p48 = scmp.eq.s32.totalorder %s10, 3
    %p49 = scmp.ne.s32.totalorder %s44, %s46
    %p50 = scmp.eq.s32.totalorder %s10, 0
    %p51 = por %p49, %p50
    %p52 = scmp.ne.s32.totalorder %s44, %s46
    %p53 = scmp.eq.s32.totalorder %s15, 3
    %p54 = por %p52, %p53
    %p55 = scmp.ne.s32.totalorder %s46, %s47
    %p56 = scmp.eq.s32.totalorder %s15, 0
    %p57 = por %p55, %p56
    %p58 = scmp.ne.s32.totalorder %s46, %s47
    %p59 = scmp.eq.s32.totalorder %s16, 3
    %p60 = por %p58, %p59
    %p62 = scmp.ne.s32.totalorder %s47, %s61
    %p63 = scmp.eq.s32.totalorder %s16, 0
    %p64 = por %p62, %p63
    %s65 = ssub.s32 %s10, %s17
    %p66 = scmp.eq.s32.totalorder %s65, 0
    %s68 = sadd.s32 %s67, 1
    %s69 = scalar_select %p66, %s67, %s68
    %p72 = pneg %p66
    %p73 = scmp.eq.s32.totalorder %s10, 3
    %p74 = por %p72, %p73
    %p75 = scmp.ne.s32.totalorder %s67, %s70
    %p76 = scmp.eq.s32.totalorder %s10, 0
    %p77 = por %p75, %p76
    %p78 = scmp.ne.s32.totalorder %s67, %s70
    %p79 = scmp.eq.s32.totalorder %s15, 3
    %p80 = por %p78, %p79
    %p81 = scmp.ne.s32.totalorder %s70, %s71
    %p82 = scmp.eq.s32.totalorder %s15, 0
    %p83 = por %p81, %p82
    %p84 = scmp.ne.s32.totalorder %s70, %s71
    %p85 = scmp.eq.s32.totalorder %s16, 3
    %p86 = por %p84, %p85
    %p88 = scmp.ne.s32.totalorder %s71, %s87
    %p89 = scmp.eq.s32.totalorder %s16, 0
    %p90 = por %p88, %p89
    %s91 = ssub.s32 %s10, %s17
    %p92 = scmp.eq.s32.totalorder %s91, 0
    %s94 = sadd.s32 %s93, 1
    %s95 = scalar_select %p92, %s93, %s94
    %p98 = pneg %p92
    %p99 = scmp.eq.s32.totalorder %s10, 3
    %p100 = por %p98, %p99
    %p101 = scmp.ne.s32.totalorder %s93, %s96
    %p102 = scmp.eq.s32.totalorder %s10, 0
    %p103 = por %p101, %p102
    %p104 = scmp.ne.s32.totalorder %s93, %s96
    %p105 = scmp.eq.s32.totalorder %s15, 3
    %p106 = por %p104, %p105
    %p107 = scmp.ne.s32.totalorder %s96, %s97
    %p108 = scmp.eq.s32.totalorder %s15, 0
    %p109 = por %p107, %p108
    %p110 = scmp.ne.s32.totalorder %s96, %s97
    %p111 = scmp.eq.s32.totalorder %s16, 3
    %p112 = por %p110, %p111
    %p114 = scmp.ne.s32.totalorder %s97, %s113
    %p115 = scmp.eq.s32.totalorder %s16, 0
    %p116 = por %p114, %p115
    %p117 = scmp.le.s32.totalorder 1, %s10
    %p118 = scmp.lt.s32.totalorder %s10, 5
    %p119 = pnand %p117, %p118
    %p120 = pneg %p119
    // Predicated region
    $region9: #{double_conv.6} parent=5 // pred_check
      _
    $region10: #{double_conv.6} parent=5 // pred_check_branch
      %122 = sbr.rel (%p119) target = $region12
    $region11: #{double_conv.6} parent=5 // pred_region
      %s123 = ssub.s32 %s10, 1
      // Predicated region
      $region13: #{double_conv.6} parent=11 // pred_check
        %p124 = pneg %p57
      $region14: #{double_conv.6} parent=11 // pred_check_branch
        %126 = sbr.rel (%p124) target = $region16
      $region15: #{double_conv.6} parent=11 // pred_region
        _
      $region16: #{double_conv.6} parent=11 // pred_fallthru
        _
    $region12: #{double_conv.6} parent=5 // pred_fallthru
      _
    %p127 = scmp.lt.s32.totalorder %s10, 4
    // Predicated region
    $region17: #{double_conv.6} parent=5 // pred_check
      %p128 = pneg %p127
    $region18: #{double_conv.6} parent=5 // pred_check_branch
      %130 = sbr.rel (%p128) target = $region20
    $region19: #{double_conv.6} parent=5 // pred_region
      // Predicated region
      $region21: #{double_conv.6} parent=19 // pred_check
        %p131 = pneg %p30
      $region22: #{double_conv.6} parent=19 // pred_check_branch
        %133 = sbr.rel (%p131) target = $region24
      $region23: #{double_conv.6} parent=19 // pred_region
        %p134 = scmp.lt.s32.totalorder %s10, 3
        %s135 = scalar_select %p134, %s10, 3
        %s136 = smul.addr %s135, 30
        %s137 = smul.addr %s136, 4
        %s138 = scalar_lea.vmem %s0, %s137
      $region24: #{double_conv.6} parent=19 // pred_fallthru
        _
    $region20: #{double_conv.6} parent=5 // pred_fallthru
      _
    %p139 = scmp.le.s32.totalorder 1, %s10
    %p140 = scmp.lt.s32.totalorder %s10, 5
    %p141 = pnand %p139, %p140
    %p142 = pneg %p141
    // Predicated region
    $region25: #{double_conv.6} parent=5 // pred_check
      _
    $region26: #{double_conv.6} parent=5 // pred_check_branch
      %144 = sbr.rel (%p141) target = $region28
    $region27: #{double_conv.6} parent=5 // pred_region
      %s145 = ssub.s32 %s10, 1
      %p146 = scmp.lt.s32.totalorder %s15, 3
      %s147 = scalar_select %p146, %s15, 3
      %s148 = smul.addr %s147, 30
      %s149 = smul.addr %s148, 4
      %s150 = scalar_lea.vmem %s0, %s149
      %p151 = pneg %p36
      %p152 = pneg %p33
      %p153 = pneg %p57
      %p154 = pneg %p54
      %p155 = pneg %p83
      %p156 = pneg %p80
      %p157 = scmp.lt.s32.totalorder %s15, 3
      %s158 = scalar_select %p157, %s15, 3
      %s159 = smul.addr %s158, 16
      %s160 = smul.addr %s159, 8
      %s161 = scalar_lea.vmem %s2, %s160
      %p162 = pneg %p109
      %p163 = pneg %p106
      %p164 = scmp.lt.s32.totalorder %s15, 3
      %s165 = scalar_select %p164, %s15, 3
      %s166 = smul.addr %s165, 2
      %s167 = scalar_lea.vmem %s3, %s166
      %p168 = scmp.lt.s32.totalorder %s15, 3
      %s169 = scalar_select %p168, %s15, 3
      %s170 = smul.addr %s169, 30
      %s171 = smul.addr %s170, 4
      %s172 = scalar_lea.vmem %s0, %s171
      %p173 = scmp.lt.s32.totalorder %s15, 3
      %s174 = scalar_select %p173, %s15, 3
      %s175 = smul.addr %s174, 16
      %s176 = smul.addr %s175, 8
      %s177 = scalar_lea.vmem %s2, %s176
      %p178 = scmp.lt.s32.totalorder %s15, 3
      %s179 = scalar_select %p178, %s15, 3
      %s180 = smul.addr %s179, 2
      %s181 = scalar_lea.vmem %s3, %s180
      %v183 = vld [vmem:[%s172] sm:$0xf]
      %v184 = vld [vmem:[%s172 + $0x4] sm:$0xf]
      %v185 = vld [vmem:[%s172 + $0x8] sm:$0x1]
      %v186 = vld [vmem:[%s172 + $0xc] sm:$0xf]
      %v187 = vld [vmem:[%s172 + $0x10] sm:$0xf]
      %v188 = vld [vmem:[%s172 + $0x14] sm:$0x1]
      %v189 = vld [vmem:[%s172 + $0x18] sm:$0xf]
      %v190 = vld [vmem:[%s172 + $0x1c] sm:$0xf]
      %v191 = vld [vmem:[%s172 + $0x20] sm:$0x1]
      %v192 = vld [vmem:[%s172 + $0x24] sm:$0xf]
      %v193 = vld [vmem:[%s172 + $0x28] sm:$0xf]
      %v194 = vld [vmem:[%s172 + $0x2c] sm:$0x1]
      %v195 = vld [vmem:[%s172 + $0x30] sm:$0xf]
      %v196 = vld [vmem:[%s172 + $0x34] sm:$0xf]
      %v197 = vld [vmem:[%s172 + $0x38] sm:$0x1]
      %v198 = vld [vmem:[%s172 + $0x3c] sm:$0xf]
      %v199 = vld [vmem:[%s172 + $0x40] sm:$0xf]
      %v200 = vld [vmem:[%s172 + $0x44] sm:$0x1]
      %v201 = vld [vmem:[%s172 + $0x48] sm:$0xf]
      %v202 = vld [vmem:[%s172 + $0x4c] sm:$0xf]
      %v203 = vld [vmem:[%s172 + $0x50] sm:$0x1]
      %v204 = vld [vmem:[%s172 + $0x54] sm:$0xf]
      %v205 = vld [vmem:[%s172 + $0x58] sm:$0xf]
      %v206 = vld [vmem:[%s172 + $0x5c] sm:$0x1]
      %v207 = vld [vmem:[%s172 + $0x60] sm:$0xf]
      %v208 = vld [vmem:[%s172 + $0x64] sm:$0xf]
      %v209 = vld [vmem:[%s172 + $0x68] sm:$0x1]
      %v210 = vld [vmem:[%s172 + $0x6c] sm:$0xf]
      %v211 = vld [vmem:[%s172 + $0x70] sm:$0xf]
      %v212 = vld [vmem:[%s172 + $0x74] sm:$0x1]
      %vm213 = vsmask.f32 3328
      %vm214 = vsmask.f32 7440
      %vm215 = vmor %vm213, %vm214
      %v217 = vshrl.u32 %v183, 16
      %v219 = vrot.slane %v217, 4
      %v220 = vshll.u32 %v183, 16
      %v222 = vrot.slane %v220, 5
      %v223 = vor.u32 %v219, %v222
      %v224 = vrot.slane %v223, 4
      %v226 = vshll.u32 %v184, 16
      %v228 = vrot.slane %v226, 5
      %v229 = vsel %vm215, %v224, %v228
      %v230 = vshrl.u32 %v184, 16
      %v232 = vrot.slane %v230, 4
      %v233 = vor.u32 %v232, %v228
      %v234 = vrot.slane %v233, 4
      %v236 = vshll.u32 %v185, 16
      %v238 = vrot.slane %v236, 5
      %v239 = vsel %vm215, %v234, %v238
      %v241 = vshrl.u32 %v186, 16
      %v243 = vrot.slane %v241, 4
      %v244 = vshll.u32 %v186, 16
      %v246 = vrot.slane %v244, 5
      %v247 = vor.u32 %v243, %v246
      %v248 = vrot.slane %v247, 4
      %v250 = vshll.u32 %v187, 16
      %v252 = vrot.slane %v250, 5
      %v253 = vsel %vm215, %v248, %v252
      %v254 = vshrl.u32 %v187, 16
      %v256 = vrot.slane %v254, 4
      %v257 = vor.u32 %v256, %v252
      %v258 = vrot.slane %v257, 4
      %v260 = vshll.u32 %v188, 16
      %v262 = vrot.slane %v260, 5
      %v263 = vsel %vm215, %v258, %v262
      %v265 = vshrl.u32 %v189, 16
      %v267 = vrot.slane %v265, 4
      %v268 = vshll.u32 %v189, 16
      %v270 = vrot.slane %v268, 5
      %v271 = vor.u32 %v267, %v270
      %v272 = vrot.slane %v271, 4
      %v274 = vshll.u32 %v190, 16
      %v276 = vrot.slane %v274, 5
      %v277 = vsel %vm215, %v272, %v276
      %v278 = vshrl.u32 %v190, 16
      %v280 = vrot.slane %v278, 4
      %v281 = vor.u32 %v280, %v276
      %v282 = vrot.slane %v281, 4
      %v284 = vshll.u32 %v191, 16
      %v286 = vrot.slane %v284, 5
      %v287 = vsel %vm215, %v282, %v286
      %v289 = vshrl.u32 %v192, 16
      %v291 = vrot.slane %v289, 4
      %v292 = vshll.u32 %v192, 16
      %v294 = vrot.slane %v292, 5
      %v295 = vor.u32 %v291, %v294
      %v296 = vrot.slane %v295, 4
      %v298 = vshll.u32 %v193, 16
      %v300 = vrot.slane %v298, 5
      %v301 = vsel %vm215, %v296, %v300
      %v302 = vshrl.u32 %v193, 16
      %v304 = vrot.slane %v302, 4
      %v305 = vor.u32 %v304, %v300
      %v306 = vrot.slane %v305, 4
      %v308 = vshll.u32 %v194, 16
      %v310 = vrot.slane %v308, 5
      %v311 = vsel %vm215, %v306, %v310
      %v313 = vshrl.u32 %v195, 16
      %v315 = vrot.slane %v313, 4
      %v316 = vshll.u32 %v195, 16
      %v318 = vrot.slane %v316, 5
      %v319 = vor.u32 %v315, %v318
      %v320 = vrot.slane %v319, 4
      %v322 = vshll.u32 %v196, 16
      %v324 = vrot.slane %v322, 5
      %v325 = vsel %vm215, %v320, %v324
      %v326 = vshrl.u32 %v196, 16
      %v328 = vrot.slane %v326, 4
      %v329 = vor.u32 %v328, %v324
      %v330 = vrot.slane %v329, 4
      %v332 = vshll.u32 %v197, 16
      %v334 = vrot.slane %v332, 5
      %v335 = vsel %vm215, %v330, %v334
      %v337 = vshrl.u32 %v198, 16
      %v339 = vrot.slane %v337, 4
      %v340 = vshll.u32 %v198, 16
      %v342 = vrot.slane %v340, 5
      %v343 = vor.u32 %v339, %v342
      %v344 = vrot.slane %v343, 4
      %v346 = vshll.u32 %v199, 16
      %v348 = vrot.slane %v346, 5
      %v349 = vsel %vm215, %v344, %v348
      %v350 = vshrl.u32 %v199, 16
      %v352 = vrot.slane %v350, 4
      %v353 = vor.u32 %v352, %v348
      %v354 = vrot.slane %v353, 4
      %v356 = vshll.u32 %v200, 16
      %v358 = vrot.slane %v356, 5
      %v359 = vsel %vm215, %v354, %v358
      %v361 = vshrl.u32 %v201, 16
      %v363 = vrot.slane %v361, 4
      %v364 = vshll.u32 %v201, 16
      %v366 = vrot.slane %v364, 5
      %v367 = vor.u32 %v363, %v366
      %v368 = vrot.slane %v367, 4
      %v370 = vshll.u32 %v202, 16
      %v372 = vrot.slane %v370, 5
      %v373 = vsel %vm215, %v368, %v372
      %v374 = vshrl.u32 %v202, 16
      %v376 = vrot.slane %v374, 4
      %v377 = vor.u32 %v376, %v372
      %v378 = vrot.slane %v377, 4
      %v380 = vshll.u32 %v203, 16
      %v382 = vrot.slane %v380, 5
      %v383 = vsel %vm215, %v378, %v382
      %v385 = vshrl.u32 %v204, 16
      %v387 = vrot.slane %v385, 4
      %v388 = vshll.u32 %v204, 16
      %v390 = vrot.slane %v388, 5
      %v391 = vor.u32 %v387, %v390
      %v392 = vrot.slane %v391, 4
      %v394 = vshll.u32 %v205, 16
      %v396 = vrot.slane %v394, 5
      %v397 = vsel %vm215, %v392, %v396
      %v398 = vshrl.u32 %v205, 16
      %v400 = vrot.slane %v398, 4
      %v401 = vor.u32 %v400, %v396
      %v402 = vrot.slane %v401, 4
      %v404 = vshll.u32 %v206, 16
      %v406 = vrot.slane %v404, 5
      %v407 = vsel %vm215, %v402, %v406
      %vm432 = vcmask 1042432
      %vm433 = vcmask 1046532
      %vm434 = vmor %vm432, %vm433
      %v435 = vrot.slane %v183, 5
      %v436 = vrot.slane %v435, 4
      %v437 = vrot.slane %v184, 5
      %v438 = vsel %vm434, %v436, %v437
      %v439 = vrot.slane %v437, 4
      %v440 = vrot.slane %v185, 5
      %v441 = vsel %vm434, %v439, %v440
      %v442 = vrot.slane %v186, 5
      %v443 = vrot.slane %v442, 4
      %v444 = vrot.slane %v187, 5
      %v445 = vsel %vm434, %v443, %v444
      %v446 = vrot.slane %v444, 4
      %v447 = vrot.slane %v188, 5
      %v448 = vsel %vm434, %v446, %v447
      %v449 = vrot.slane %v189, 5
      %v450 = vrot.slane %v449, 4
      %v451 = vrot.slane %v190, 5
      %v452 = vsel %vm434, %v450, %v451
      %v453 = vrot.slane %v451, 4
      %v454 = vrot.slane %v191, 5
      %v455 = vsel %vm434, %v453, %v454
      %v456 = vrot.slane %v192, 5
      %v457 = vrot.slane %v456, 4
      %v458 = vrot.slane %v193, 5
      %v459 = vsel %vm434, %v457, %v458
      %v460 = vrot.slane %v458, 4
      %v461 = vrot.slane %v194, 5
      %v462 = vsel %vm434, %v460, %v461
      %v463 = vrot.slane %v195, 5
      %v464 = vrot.slane %v463, 4
      %v465 = vrot.slane %v196, 5
      %v466 = vsel %vm434, %v464, %v465
      %v467 = vrot.slane %v465, 4
      %v468 = vrot.slane %v197, 5
      %v469 = vsel %vm434, %v467, %v468
      %v470 = vrot.slane %v198, 5
      %v471 = vrot.slane %v470, 4
      %v472 = vrot.slane %v199, 5
      %v473 = vsel %vm434, %v471, %v472
      %v474 = vrot.slane %v472, 4
      %v475 = vrot.slane %v200, 5
      %v476 = vsel %vm434, %v474, %v475
      %v477 = vrot.slane %v201, 5
      %v478 = vrot.slane %v477, 4
      %v479 = vrot.slane %v202, 5
      %v480 = vsel %vm434, %v478, %v479
      %v481 = vrot.slane %v479, 4
      %v482 = vrot.slane %v203, 5
      %v483 = vsel %vm434, %v481, %v482
      %v484 = vrot.slane %v204, 5
      %v485 = vrot.slane %v484, 4
      %v486 = vrot.slane %v205, 5
      %v487 = vsel %vm434, %v485, %v486
      %v488 = vrot.slane %v486, 4
      %v489 = vrot.slane %v206, 5
      %v490 = vsel %vm434, %v488, %v489
      %v492 = vshrl.u32 %v207, 16
      %v494 = vrot.slane %v492, 4
      %v495 = vshll.u32 %v207, 16
      %v497 = vrot.slane %v495, 5
      %v498 = vor.u32 %v494, %v497
      %v499 = vrot.slane %v498, 4
      %v501 = vshll.u32 %v208, 16
      %v503 = vrot.slane %v501, 5
      %v504 = vsel %vm215, %v499, %v503
      %v505 = vshrl.u32 %v208, 16
      %v507 = vrot.slane %v505, 4
      %v508 = vor.u32 %v507, %v503
      %v509 = vrot.slane %v508, 4
      %v511 = vshll.u32 %v209, 16
      %v513 = vrot.slane %v511, 5
      %v514 = vsel %vm215, %v509, %v513
      %v518 = vrot.slane %v207, 5
      %v519 = vrot.slane %v518, 4
      %v520 = vrot.slane %v208, 5
      %v521 = vsel %vm434, %v519, %v520
      %v522 = vrot.slane %v520, 4
      %v523 = vrot.slane %v209, 5
      %v524 = vsel %vm434, %v522, %v523
      %v526 = vshrl.u32 %v210, 16
      %v528 = vrot.slane %v526, 4
      %v529 = vshll.u32 %v210, 16
      %v531 = vrot.slane %v529, 5
      %v532 = vor.u32 %v528, %v531
      %v533 = vrot.slane %v532, 4
      %v535 = vshll.u32 %v211, 16
      %v537 = vrot.slane %v535, 5
      %v538 = vsel %vm215, %v533, %v537
      %v539 = vshrl.u32 %v211, 16
      %v541 = vrot.slane %v539, 4
      %v542 = vor.u32 %v541, %v537
      %v543 = vrot.slane %v542, 4
      %v545 = vshll.u32 %v212, 16
      %v547 = vrot.slane %v545, 5
      %v548 = vsel %vm215, %v543, %v547
      %v552 = vrot.slane %v210, 5
      %v553 = vrot.slane %v552, 4
      %v554 = vrot.slane %v211, 5
      %v555 = vsel %vm434, %v553, %v554
      %v556 = vrot.slane %v554, 4
      %v557 = vrot.slane %v212, 5
      %v558 = vsel %vm434, %v556, %v557
      %v559 = vunpack.c.l.b16 %v183
      %v560 = vunpack.c.l.b16 %v184
      %v561 = vunpack.c.l.b16 %v186
      %v562 = vunpack.c.l.b16 %v187
      %v563 = vunpack.c.l.b16 %v189
      %v564 = vunpack.c.l.b16 %v190
      %v565 = vunpack.c.l.b16 %v192
      %v566 = vunpack.c.l.b16 %v193
      %v567 = vunpack.c.l.b16 %v195
      %v568 = vunpack.c.l.b16 %v196
      %v569 = vunpack.c.l.b16 %v198
      %v570 = vunpack.c.l.b16 %v199
      %v571 = vunpack.c.l.b16 %v201
      %v572 = vunpack.c.l.b16 %v202
      %v573 = vunpack.c.l.b16 %v204
      %v574 = vunpack.c.l.b16 %v205
      %v575 = vpack.c.b16 %v560, %v559
      %v576 = vpack.c.b16 %v562, %v561
      %v577 = vpack.c.b16 %v564, %v563
      %v578 = vpack.c.b16 %v566, %v565
      %v579 = vpack.c.b16 %v568, %v567
      %v580 = vpack.c.b16 %v570, %v569
      %v581 = vpack.c.b16 %v572, %v571
      %v582 = vpack.c.b16 %v574, %v573
      %v583 = vunpack.c.l.b16 %v229
      %v584 = vunpack.c.l.b16 %v239
      %v585 = vunpack.c.l.b16 %v253
      %v586 = vunpack.c.l.b16 %v263
      %v587 = vunpack.c.l.b16 %v277
      %v588 = vunpack.c.l.b16 %v287
      %v589 = vunpack.c.l.b16 %v301
      %v590 = vunpack.c.l.b16 %v311
      %v591 = vunpack.c.l.b16 %v325
      %v592 = vunpack.c.l.b16 %v335
      %v593 = vunpack.c.l.b16 %v349
      %v594 = vunpack.c.l.b16 %v359
      %v595 = vunpack.c.l.b16 %v373
      %v596 = vunpack.c.l.b16 %v383
      %v597 = vunpack.c.l.b16 %v397
      %v598 = vunpack.c.l.b16 %v407
      %v599 = vpack.c.b16 %v584, %v583
      %v600 = vpack.c.b16 %v586, %v585
      %v601 = vpack.c.b16 %v588, %v587
      %v602 = vpack.c.b16 %v590, %v589
      %v603 = vpack.c.b16 %v592, %v591
      %v604 = vpack.c.b16 %v594, %v593
      %v605 = vpack.c.b16 %v596, %v595
      %v606 = vpack.c.b16 %v598, %v597
      %607 = vrot.lane.b32.xlu0 %v599, 8
      %v608 = vpop.permute.xlu0 %607
      %609 = vrot.lane.b32.xlu0 %v600, 8
      %v610 = vpop.permute.xlu0 %609
      %611 = vrot.lane.b32.xlu0 %v601, 8
      %v612 = vpop.permute.xlu0 %611
      %613 = vrot.lane.b32.xlu0 %v602, 8
      %v614 = vpop.permute.xlu0 %613
      %615 = vrot.lane.b32.xlu0 %v603, 8
      %v616 = vpop.permute.xlu0 %615
      %617 = vrot.lane.b32.xlu0 %v604, 8
      %v618 = vpop.permute.xlu0 %617
      %619 = vrot.lane.b32.xlu0 %v605, 8
      %v620 = vpop.permute.xlu0 %619
      %621 = vrot.lane.b32.xlu0 %v606, 8
      %v622 = vpop.permute.xlu0 %621
      %v623 = vunpack.c.l.b16 %v438
      %v624 = vunpack.c.l.b16 %v441
      %v625 = vunpack.c.l.b16 %v445
      %v626 = vunpack.c.l.b16 %v448
      %v627 = vunpack.c.l.b16 %v452
      %v628 = vunpack.c.l.b16 %v455
      %v629 = vunpack.c.l.b16 %v459
      %v630 = vunpack.c.l.b16 %v462
      %v631 = vunpack.c.l.b16 %v466
      %v632 = vunpack.c.l.b16 %v469
      %v633 = vunpack.c.l.b16 %v473
      %v634 = vunpack.c.l.b16 %v476
      %v635 = vunpack.c.l.b16 %v480
      %v636 = vunpack.c.l.b16 %v483
      %v637 = vunpack.c.l.b16 %v487
      %v638 = vunpack.c.l.b16 %v490
      %v639 = vpack.c.b16 %v624, %v623
      %v640 = vpack.c.b16 %v626, %v625
      %v641 = vpack.c.b16 %v628, %v627
      %v642 = vpack.c.b16 %v630, %v629
      %v643 = vpack.c.b16 %v632, %v631
      %v644 = vpack.c.b16 %v634, %v633
      %v645 = vpack.c.b16 %v636, %v635
      %v646 = vpack.c.b16 %v638, %v637
      %647 = vrot.lane.b32.xlu0 %v639, 16
      %v648 = vpop.permute.xlu0 %647
      %649 = vrot.lane.b32.xlu0 %v640, 16
      %v650 = vpop.permute.xlu0 %649
      %651 = vrot.lane.b32.xlu0 %v641, 16
      %v652 = vpop.permute.xlu0 %651
      %653 = vrot.lane.b32.xlu0 %v642, 16
      %v654 = vpop.permute.xlu0 %653
      %655 = vrot.lane.b32.xlu0 %v643, 16
      %v656 = vpop.permute.xlu0 %655
      %657 = vrot.lane.b32.xlu0 %v644, 16
      %v658 = vpop.permute.xlu0 %657
      %659 = vrot.lane.b32.xlu0 %v645, 16
      %v660 = vpop.permute.xlu0 %659
      %661 = vrot.lane.b32.xlu0 %v646, 16
      %v662 = vpop.permute.xlu0 %661
      %v663 = vunpack.c.l.b16 %v207
      %v664 = vunpack.c.l.b16 %v208
      %v665 = vpack.c.b16 %v664, %v663
      %666 = vrot.lane.b32.xlu0 %v576, 24
      %v667 = vpop.permute.xlu0 %666
      %668 = vrot.lane.b32.xlu0 %v577, 24
      %v669 = vpop.permute.xlu0 %668
      %670 = vrot.lane.b32.xlu0 %v578, 24
      %v671 = vpop.permute.xlu0 %670
      %672 = vrot.lane.b32.xlu0 %v579, 24
      %v673 = vpop.permute.xlu0 %672
      %674 = vrot.lane.b32.xlu0 %v580, 24
      %v675 = vpop.permute.xlu0 %674
      %676 = vrot.lane.b32.xlu0 %v581, 24
      %v677 = vpop.permute.xlu0 %676
      %678 = vrot.lane.b32.xlu0 %v582, 24
      %v679 = vpop.permute.xlu0 %678
      %680 = vrot.lane.b32.xlu0 %v665, 24
      %v681 = vpop.permute.xlu0 %680
      %v682 = vunpack.c.l.b16 %v504
      %v683 = vunpack.c.l.b16 %v514
      %v684 = vpack.c.b16 %v683, %v682
      %685 = vrot.lane.b32.xlu0 %v600, 32
      %v686 = vpop.permute.xlu0 %685
      %687 = vrot.lane.b32.xlu0 %v601, 32
      %v688 = vpop.permute.xlu0 %687
      %689 = vrot.lane.b32.xlu0 %v602, 32
      %v690 = vpop.permute.xlu0 %689
      %691 = vrot.lane.b32.xlu0 %v603, 32
      %v692 = vpop.permute.xlu0 %691
      %693 = vrot.lane.b32.xlu0 %v604, 32
      %v694 = vpop.permute.xlu0 %693
      %695 = vrot.lane.b32.xlu0 %v605, 32
      %v696 = vpop.permute.xlu0 %695
      %697 = vrot.lane.b32.xlu0 %v606, 32
      %v698 = vpop.permute.xlu0 %697
      %699 = vrot.lane.b32.xlu0 %v684, 32
      %v700 = vpop.permute.xlu0 %699
      %v701 = vunpack.c.l.b16 %v521
      %v702 = vunpack.c.l.b16 %v524
      %v703 = vpack.c.b16 %v702, %v701
      %704 = vrot.lane.b32.xlu0 %v640, 40
      %v705 = vpop.permute.xlu0 %704
      %706 = vrot.lane.b32.xlu0 %v641, 40
      %v707 = vpop.permute.xlu0 %706
      %708 = vrot.lane.b32.xlu0 %v642, 40
      %v709 = vpop.permute.xlu0 %708
      %710 = vrot.lane.b32.xlu0 %v643, 40
      %v711 = vpop.permute.xlu0 %710
      %712 = vrot.lane.b32.xlu0 %v644, 40
      %v713 = vpop.permute.xlu0 %712
      %714 = vrot.lane.b32.xlu0 %v645, 40
      %v715 = vpop.permute.xlu0 %714
      %716 = vrot.lane.b32.xlu0 %v646, 40
      %v717 = vpop.permute.xlu0 %716
      %718 = vrot.lane.b32.xlu0 %v703, 40
      %v719 = vpop.permute.xlu0 %718
      %v720 = vunpack.c.l.b16 %v210
      %v721 = vunpack.c.l.b16 %v211
      %v722 = vpack.c.b16 %v721, %v720
      %723 = vrot.lane.b32.xlu0 %v577, 48
      %v724 = vpop.permute.xlu0 %723
      %725 = vrot.lane.b32.xlu0 %v578, 48
      %v726 = vpop.permute.xlu0 %725
      %727 = vrot.lane.b32.xlu0 %v579, 48
      %v728 = vpop.permute.xlu0 %727
      %729 = vrot.lane.b32.xlu0 %v580, 48
      %v730 = vpop.permute.xlu0 %729
      %731 = vrot.lane.b32.xlu0 %v581, 48
      %v732 = vpop.permute.xlu0 %731
      %733 = vrot.lane.b32.xlu0 %v582, 48
      %v734 = vpop.permute.xlu0 %733
      %735 = vrot.lane.b32.xlu0 %v665, 48
      %v736 = vpop.permute.xlu0 %735
      %737 = vrot.lane.b32.xlu0 %v722, 48
      %v738 = vpop.permute.xlu0 %737
      %v739 = vunpack.c.l.b16 %v538
      %v740 = vunpack.c.l.b16 %v548
      %v741 = vpack.c.b16 %v740, %v739
      %742 = vrot.lane.b32.xlu0 %v601, 56
      %v743 = vpop.permute.xlu0 %742
      %744 = vrot.lane.b32.xlu0 %v602, 56
      %v745 = vpop.permute.xlu0 %744
      %746 = vrot.lane.b32.xlu0 %v603, 56
      %v747 = vpop.permute.xlu0 %746
      %748 = vrot.lane.b32.xlu0 %v604, 56
      %v749 = vpop.permute.xlu0 %748
      %750 = vrot.lane.b32.xlu0 %v605, 56
      %v751 = vpop.permute.xlu0 %750
      %752 = vrot.lane.b32.xlu0 %v606, 56
      %v753 = vpop.permute.xlu0 %752
      %754 = vrot.lane.b32.xlu0 %v684, 56
      %v755 = vpop.permute.xlu0 %754
      %756 = vrot.lane.b32.xlu0 %v741, 56
      %v757 = vpop.permute.xlu0 %756
      %v758 = vunpack.c.l.b16 %v555
      %v759 = vunpack.c.l.b16 %v558
      %v760 = vpack.c.b16 %v759, %v758
      %761 = vrot.lane.b32.xlu0 %v641, 64
      %v762 = vpop.permute.xlu0 %761
      %763 = vrot.lane.b32.xlu0 %v642, 64
      %v764 = vpop.permute.xlu0 %763
      %765 = vrot.lane.b32.xlu0 %v643, 64
      %v766 = vpop.permute.xlu0 %765
      %767 = vrot.lane.b32.xlu0 %v644, 64
      %v768 = vpop.permute.xlu0 %767
      %769 = vrot.lane.b32.xlu0 %v645, 64
      %v770 = vpop.permute.xlu0 %769
      %771 = vrot.lane.b32.xlu0 %v646, 64
      %v772 = vpop.permute.xlu0 %771
      %773 = vrot.lane.b32.xlu0 %v703, 64
      %v774 = vpop.permute.xlu0 %773
      %775 = vrot.lane.b32.xlu0 %v760, 64
      %v776 = vpop.permute.xlu0 %775
      %vm777 = vcmask 64512
      %v780 = vsel %vm777, %v575, %v608
      %v783 = vsel %vm777, %v576, %v610
      %v786 = vsel %vm777, %v577, %v612
      %v789 = vsel %vm777, %v578, %v614
      %v792 = vsel %vm777, %v579, %v616
      %v795 = vsel %vm777, %v580, %v618
      %v798 = vsel %vm777, %v581, %v620
      %v801 = vsel %vm777, %v582, %v622
      %vm802 = vcmask 130048
      %v804 = vsel %vm802, %v780, %v648
      %v806 = vsel %vm802, %v783, %v650
      %v808 = vsel %vm802, %v786, %v652
      %v810 = vsel %vm802, %v789, %v654
      %v812 = vsel %vm802, %v792, %v656
      %v814 = vsel %vm802, %v795, %v658
      %v816 = vsel %vm802, %v798, %v660
      %v818 = vsel %vm802, %v801, %v662
      %vm819 = vcmask 195584
      %v821 = vsel %vm819, %v804, %v667
      %v823 = vsel %vm819, %v806, %v669
      %v825 = vsel %vm819, %v808, %v671
      %v827 = vsel %vm819, %v810, %v673
      %v829 = vsel %vm819, %v812, %v675
      %v831 = vsel %vm819, %v814, %v677
      %v833 = vsel %vm819, %v816, %v679
      %v835 = vsel %vm819, %v818, %v681
      %vm836 = vcmask 261120
      %v838 = vsel %vm836, %v821, %v686
      %v840 = vsel %vm836, %v823, %v688
      %v842 = vsel %vm836, %v825, %v690
      %v844 = vsel %vm836, %v827, %v692
      %v846 = vsel %vm836, %v829, %v694
      %v848 = vsel %vm836, %v831, %v696
      %v850 = vsel %vm836, %v833, %v698
      %v852 = vsel %vm836, %v835, %v700
      %vm853 = vcmask 326656
      %v855 = vsel %vm853, %v838, %v705
      %v857 = vsel %vm853, %v840, %v707
      %v859 = vsel %vm853, %v842, %v709
      %v861 = vsel %vm853, %v844, %v711
      %v863 = vsel %vm853, %v846, %v713
      %v865 = vsel %vm853, %v848, %v715
      %v867 = vsel %vm853, %v850, %v717
      %v869 = vsel %vm853, %v852, %v719
      %vm870 = vcmask 392192
      %v872 = vsel %vm870, %v855, %v724
      %v874 = vsel %vm870, %v857, %v726
      %v876 = vsel %vm870, %v859, %v728
      %v878 = vsel %vm870, %v861, %v730
      %v880 = vsel %vm870, %v863, %v732
      %v882 = vsel %vm870, %v865, %v734
      %v884 = vsel %vm870, %v867, %v736
      %v886 = vsel %vm870, %v869, %v738
      %vm887 = vcmask 457728
      %v889 = vsel %vm887, %v872, %v743
      %v891 = vsel %vm887, %v874, %v745
      %v893 = vsel %vm887, %v876, %v747
      %v895 = vsel %vm887, %v878, %v749
      %v897 = vsel %vm887, %v880, %v751
      %v899 = vsel %vm887, %v882, %v753
      %v901 = vsel %vm887, %v884, %v755
      %v903 = vsel %vm887, %v886, %v757
      %vm904 = vcmask 523264
      %v906 = vsel %vm904, %v889, %v762
      %v908 = vsel %vm904, %v891, %v764
      %v910 = vsel %vm904, %v893, %v766
      %v912 = vsel %vm904, %v895, %v768
      %v914 = vsel %vm904, %v897, %v770
      %v916 = vsel %vm904, %v899, %v772
      %v918 = vsel %vm904, %v901, %v774
      %v920 = vsel %vm904, %v903, %v776
      %v921 = vld [vmem:[%s1] sm:$0xf]
      %v922 = vld [vmem:[%s1 + $0x4] sm:$0xf]
      %v923 = vld [vmem:[%s1 + $0x8] sm:$0xf]
      %v924 = vld [vmem:[%s1 + $0xc] sm:$0xf]
      %v925 = vld [vmem:[%s1 + $0x10] sm:$0xf]
      %v926 = vld [vmem:[%s1 + $0x14] sm:$0xf]
      %v927 = vld [vmem:[%s1 + $0x18] sm:$0xf]
      %v928 = vld [vmem:[%s1 + $0x1c] sm:$0xf]
      %v929 = vld [vmem:[%s1 + $0x20] sm:$0xf]
      %v939 = vunpack.c.l.b16 %v921
      %v940 = vunpack.c.l.b16 %v922
      %v941 = vunpack.c.l.b16 %v923
      %v942 = vunpack.c.l.b16 %v924
      %v943 = vunpack.c.l.b16 %v925
      %v944 = vunpack.c.l.b16 %v926
      %v945 = vunpack.c.l.b16 %v927
      %v946 = vunpack.c.l.b16 %v928
      %v947 = vunpack.c.l.b16 %v929
      %v948 = vpack.c.b16 %v940, %v939
      %v949 = vpack.c.b16 %v942, %v941
      %v950 = vpack.c.b16 %v944, %v943
      %v951 = vpack.c.b16 %v946, %v945
      %v952 = vpack.c.b16 %v947, %v947
      %vm957 = vcmask 588800
      %v958 = vsel %vm957, %v906, 0
      %v960 = vsel %vm957, %v908, 0
      %v962 = vsel %vm957, %v910, 0
      %v964 = vsel %vm957, %v912, 0
      %v966 = vsel %vm957, %v914, 0
      %v968 = vsel %vm957, %v916, 0
      %v970 = vsel %vm957, %v918, 0
      %v972 = vsel %vm957, %v920, 0
      %vm974 = vcmask 1043456
      %v976 = vsel %vm974, %v952, 0
      %978 = vmatpush.bf16.msra.mxu0 0
      %979 = vmatpush.bf16.msra.mxu0 0
      %980 = vmatpush.bf16.msra.mxu0 0
      %981 = vmatpush.bf16.msra.mxu0 %v976
      %982 = vmatpush.bf16.msra.mxu0 %v951
      %983 = vmatpush.bf16.msra.mxu0 %v950
      %984 = vmatpush.bf16.msra.mxu0 %v949
      %985 = vmatpush.bf16.msra.mxu0 %v948
      %986 = vmatmul.bf16.gmra.mxu0 %v958
      %v987 = vpop.f32.mrf.mxu0
      %v988 = vadd.f32 0.0, %v987
      %v989 = vpop.f32.mrf.mxu0
      %v990 = vadd.f32 0.0, %v989
      %991 = vmatmul.bf16.gmra.mxu0 %v960
      %v992 = vpop.f32.mrf.mxu0
      %v993 = vadd.f32 0.0, %v992
      %v994 = vpop.f32.mrf.mxu0
      %v995 = vadd.f32 0.0, %v994
      %996 = vmatmul.bf16.gmra.mxu0 %v962
      %v997 = vpop.f32.mrf.mxu0
      %v998 = vadd.f32 0.0, %v997
      %v999 = vpop.f32.mrf.mxu0
      %v1000 = vadd.f32 0.0, %v999
      %1001 = vmatmul.bf16.gmra.mxu0 %v964
      %v1002 = vpop.f32.mrf.mxu0
      %v1003 = vadd.f32 0.0, %v1002
      %v1004 = vpop.f32.mrf.mxu0
      %v1005 = vadd.f32 0.0, %v1004
      %1006 = vmatmul.bf16.gmra.mxu0 %v966
      %v1007 = vpop.f32.mrf.mxu0
      %v1008 = vadd.f32 0.0, %v1007
      %v1009 = vpop.f32.mrf.mxu0
      %v1010 = vadd.f32 0.0, %v1009
      %1011 = vmatmul.bf16.gmra.mxu0 %v968
      %v1012 = vpop.f32.mrf.mxu0
      %v1013 = vadd.f32 0.0, %v1012
      %v1014 = vpop.f32.mrf.mxu0
      %v1015 = vadd.f32 0.0, %v1014
      %1016 = vmatmul.bf16.gmra.mxu0 %v970
      %v1017 = vpop.f32.mrf.mxu0
      %v1018 = vadd.f32 0.0, %v1017
      %v1019 = vpop.f32.mrf.mxu0
      %v1020 = vadd.f32 0.0, %v1019
      %1021 = vmatmul.bf16.gmra.mxu0 %v972
      %v1022 = vpop.f32.mrf.mxu0
      %v1023 = vadd.f32 0.0, %v1022
      %v1024 = vpop.f32.mrf.mxu0
      %v1025 = vadd.f32 0.0, %v1024
      %1026 = vdwg.mxu0
      %1027 = vst.msk [vmem:[%s177] sm:$0xff] %vm777, %v988
      %1028 = vst.msk [vmem:[%s177 + $0x8] sm:$0xff] %vm777, %v990
      %1029 = vst.msk [vmem:[%s177 + $0x10] sm:$0xff] %vm777, %v993
      %1030 = vst.msk [vmem:[%s177 + $0x18] sm:$0xff] %vm777, %v995
      %1031 = vst.msk [vmem:[%s177 + $0x20] sm:$0xff] %vm777, %v998
      %1032 = vst.msk [vmem:[%s177 + $0x28] sm:$0xff] %vm777, %v1000
      %1033 = vst.msk [vmem:[%s177 + $0x30] sm:$0xff] %vm777, %v1003
      %1034 = vst.msk [vmem:[%s177 + $0x38] sm:$0xff] %vm777, %v1005
      %1035 = vst.msk [vmem:[%s177 + $0x40] sm:$0xff] %vm777, %v1008
      %1036 = vst.msk [vmem:[%s177 + $0x48] sm:$0xff] %vm777, %v1010
      %1037 = vst.msk [vmem:[%s177 + $0x50] sm:$0xff] %vm777, %v1013
      %1038 = vst.msk [vmem:[%s177 + $0x58] sm:$0xff] %vm777, %v1015
      %1039 = vst.msk [vmem:[%s177 + $0x60] sm:$0xff] %vm777, %v1018
      %1040 = vst.msk [vmem:[%s177 + $0x68] sm:$0xff] %vm777, %v1020
      %1041 = vst.msk [vmem:[%s177 + $0x70] sm:$0xff] %vm777, %v1023
      %1042 = vst.msk [vmem:[%s177 + $0x78] sm:$0xff] %vm777, %v1025
      %v1043 = vsel %vm777, %v988, 0.0
      %v1044 = vsel %vm777, %v990, 0.0
      %v1045 = vadd.f32 %v1043, %v1044
      %v1046 = vsel %vm777, %v993, 0.0
      %v1047 = vadd.f32 %v1045, %v1046
      %v1048 = vsel %vm777, %v995, 0.0
      %v1049 = vadd.f32 %v1047, %v1048
      %v1050 = vsel %vm777, %v998, 0.0
      %v1051 = vadd.f32 %v1049, %v1050
      %v1052 = vsel %vm777, %v1000, 0.0
      %v1053 = vadd.f32 %v1051, %v1052
      %v1054 = vsel %vm777, %v1003, 0.0
      %v1055 = vadd.f32 %v1053, %v1054
      %v1056 = vsel %vm777, %v1005, 0.0
      %v1057 = vadd.f32 %v1055, %v1056
      %v1058 = vsel %vm777, %v1008, 0.0
      %v1059 = vadd.f32 %v1057, %v1058
      %v1060 = vsel %vm777, %v1010, 0.0
      %v1061 = vadd.f32 %v1059, %v1060
      %v1062 = vsel %vm777, %v1013, 0.0
      %v1063 = vadd.f32 %v1061, %v1062
      %v1064 = vsel %vm777, %v1015, 0.0
      %v1065 = vadd.f32 %v1063, %v1064
      %v1066 = vsel %vm777, %v1018, 0.0
      %v1067 = vadd.f32 %v1065, %v1066
      %v1068 = vsel %vm777, %v1020, 0.0
      %v1069 = vadd.f32 %v1067, %v1068
      %v1070 = vsel %vm777, %v1023, 0.0
      %v1071 = vadd.f32 %v1069, %v1070
      %v1072 = vsel %vm777, %v1025, 0.0
      %v1073 = vadd.f32 %v1071, %v1072
      %v1074 = vrot.slane %v1073, 4
      %v1075 = vadd.f32 %v1073, %v1074
      %v1076 = vrot.slane %v1075, 2
      %v1077 = vadd.f32 %v1075, %v1076
      %v1078 = vrot.slane %v1077, 1
      %v1079 = vadd.f32 %v1077, %v1078
      %v1080 = vmul.f32 %v988, %v988
      %v1081 = vmul.f32 %v990, %v990
      %v1082 = vmul.f32 %v993, %v993
      %v1083 = vmul.f32 %v995, %v995
      %v1084 = vmul.f32 %v998, %v998
      %v1085 = vmul.f32 %v1000, %v1000
      %v1086 = vmul.f32 %v1003, %v1003
      %v1087 = vmul.f32 %v1005, %v1005
      %v1088 = vmul.f32 %v1008, %v1008
      %v1089 = vmul.f32 %v1010, %v1010
      %v1090 = vmul.f32 %v1013, %v1013
      %v1091 = vmul.f32 %v1015, %v1015
      %v1092 = vmul.f32 %v1018, %v1018
      %v1093 = vmul.f32 %v1020, %v1020
      %v1094 = vmul.f32 %v1023, %v1023
      %v1095 = vmul.f32 %v1025, %v1025
      %v1096 = vsel %vm777, %v1080, 0.0
      %v1097 = vsel %vm777, %v1081, 0.0
      %v1098 = vadd.f32 %v1096, %v1097
      %v1099 = vsel %vm777, %v1082, 0.0
      %v1100 = vadd.f32 %v1098, %v1099
      %v1101 = vsel %vm777, %v1083, 0.0
      %v1102 = vadd.f32 %v1100, %v1101
      %v1103 = vsel %vm777, %v1084, 0.0
      %v1104 = vadd.f32 %v1102, %v1103
      %v1105 = vsel %vm777, %v1085, 0.0
      %v1106 = vadd.f32 %v1104, %v1105
      %v1107 = vsel %vm777, %v1086, 0.0
      %v1108 = vadd.f32 %v1106, %v1107
      %v1109 = vsel %vm777, %v1087, 0.0
      %v1110 = vadd.f32 %v1108, %v1109
      %v1111 = vsel %vm777, %v1088, 0.0
      %v1112 = vadd.f32 %v1110, %v1111
      %v1113 = vsel %vm777, %v1089, 0.0
      %v1114 = vadd.f32 %v1112, %v1113
      %v1115 = vsel %vm777, %v1090, 0.0
      %v1116 = vadd.f32 %v1114, %v1115
      %v1117 = vsel %vm777, %v1091, 0.0
      %v1118 = vadd.f32 %v1116, %v1117
      %v1119 = vsel %vm777, %v1092, 0.0
      %v1120 = vadd.f32 %v1118, %v1119
      %v1121 = vsel %vm777, %v1093, 0.0
      %v1122 = vadd.f32 %v1120, %v1121
      %v1123 = vsel %vm777, %v1094, 0.0
      %v1124 = vadd.f32 %v1122, %v1123
      %v1125 = vsel %vm777, %v1095, 0.0
      %v1126 = vadd.f32 %v1124, %v1125
      %v1127 = vrot.slane %v1126, 4
      %v1128 = vadd.f32 %v1126, %v1127
      %v1129 = vrot.slane %v1128, 2
      %v1130 = vadd.f32 %v1128, %v1129
      %v1131 = vrot.slane %v1130, 1
      %v1132 = vadd.f32 %v1130, %v1131
      %vm1133 = vcmask 1040384
      %v1134 = vsel %vm1133, %v1079, %v1132
      %vm1135 = vcmask 58368
      %1136 = vst.msk [vmem:[%s181] sm:$0x3] %vm1135, %v1134
      %p1137 = scmp.lt.s32.totalorder %s15, 3
      %s1138 = scalar_select %p1137, %s15, 3
      %s1139 = smul.addr %s1138, 16
      %s1140 = smul.addr %s1139, 8
      %s1141 = scalar_lea.vmem %s2, %s1140
      %p1142 = scmp.lt.s32.totalorder %s15, 3
      %s1143 = scalar_select %p1142, %s15, 3
      %s1144 = smul.addr %s1143, 2
      %s1145 = scalar_lea.vmem %s3, %s1144
      // Predicated region
      $region29: #{double_conv.6} parent=27 // pred_check
        %p1146 = pneg %p80
      $region30: #{double_conv.6} parent=27 // pred_check_branch
        %1148 = sbr.rel (%p1146) target = $region32
      $region31: #{double_conv.6} parent=27 // pred_region
        _
      $region32: #{double_conv.6} parent=27 // pred_fallthru
        _
      // Predicated region
      $region33: #{double_conv.6} parent=27 // pred_check
        %p1149 = pneg %p106
      $region34: #{double_conv.6} parent=27 // pred_check_branch
        %1151 = sbr.rel (%p1149) target = $region36
      $region35: #{double_conv.6} parent=27 // pred_region
        _
      $region36: #{double_conv.6} parent=27 // pred_fallthru
        _
    $region28: #{double_conv.6} parent=5 // pred_fallthru
      _
    %p1152 = scmp.le.s32.totalorder 2, %s10
    // Predicated region
    $region37: #{double_conv.6} parent=5 // pred_check
      %p1153 = pneg %p1152
    $region38: #{double_conv.6} parent=5 // pred_check_branch
      %1155 = sbr.rel (%p1153) target = $region40
    $region39: #{double_conv.6} parent=5 // pred_region
      %s1156 = ssub.s32 %s10, 2
      // Predicated region
      $region41: #{double_conv.6} parent=39 // pred_check
        %p1157 = pneg %p86
      $region42: #{double_conv.6} parent=39 // pred_check_branch
        %1159 = sbr.rel (%p1157) target = $region44
      $region43: #{double_conv.6} parent=39 // pred_region
        %p1160 = scmp.lt.s32.totalorder %s16, 3
        %s1161 = scalar_select %p1160, %s16, 3
        %s1162 = smul.addr %s1161, 16
        %s1163 = smul.addr %s1162, 8
        %s1164 = scalar_lea.vmem %s2, %s1163
      $region44: #{double_conv.6} parent=39 // pred_fallthru
        _
      // Predicated region
      $region45: #{double_conv.6} parent=39 // pred_check
        %p1165 = pneg %p112
      $region46: #{double_conv.6} parent=39 // pred_check_branch
        %1167 = sbr.rel (%p1165) target = $region48
      $region47: #{double_conv.6} parent=39 // pred_region
        %p1168 = scmp.lt.s32.totalorder %s16, 3
        %s1169 = scalar_select %p1168, %s16, 3
        %s1170 = smul.addr %s1169, 2
        %s1171 = scalar_lea.vmem %s3, %s1170
      $region48: #{double_conv.6} parent=39 // pred_fallthru
        _
    $region40: #{double_conv.6} parent=5 // pred_fallthru
      _
  $region6: #{double_conv.6} parent=0 // loop_footer
    %s14 = sadd.s32 1, %s10
  $region7: #{double_conv.6} parent=0 // loop_footer_branch
    %9 = sbr.rel target = $region3
  $region8: #{double_conv.6} parent=0 // loop_exit
    _

</llo_original>
